<compile_context>
chip_gen: v6e
topology: v6e:2x2x1
jax: 0.10.0
libtpu: 0.0.40
codegen_flags: <defaults>
</compile_context>

<pallas_src>
import functools

import jax
import jax.numpy as jnp
from jax.experimental import pallas as pl
from jax.experimental.pallas import tpu as pltpu


def _spatial_attention_kernel(x_ref, band_ref, o_ref, pad_ref, lhs_ref, *,
                              Bb, C, W, K, P, TH, OFF):
    """Grid = (B // Bb,), one step = Bb batch elements.

    x_ref   : (Bb, C, W, TH)        input block, channels-major, lane dim = T*H
    band_ref: (K*2*TH, TH)          fused banded conv weights (built in wrapper)
    o_ref   : (Bb, W, TH)           sigmoid(conv) output block (lane-dense)
    pad_ref : VMEM (Bb, OFF+W+8, 2*TH)  W-zero-padded [avg | max], interior at row OFF=8
    lhs_ref : VMEM (Bb*W, K*2*TH)   fused matmul LHS (K shifted windows along lanes)
    """
    inv_c = 1.0 / C
    zero_rows = jnp.zeros((8, 2 * TH), jnp.float32)   # hoisted; reused for both halos

    # ---- channel reduction + padded [avg | max] staging (per batch element) ----------
    for i in range(Bb):                               # static unroll, Bb is small
        xi = x_ref[i].astype(jnp.float32)             # (C, W, TH)
        avg = jnp.sum(xi, axis=0) * inv_c             # == torch.mean(x, dim=1)
        mx = jnp.max(xi, axis=0)                      # == torch.max(x, dim=1).values
        # Zero only the W-halo rows (two aligned, unmasked 8-row stores).  Must run every
        # step: scratch is per-core under megacore "parallel", so no program_id==0 gate.
        pad_ref[i, 0:8, :] = zero_rows
        pad_ref[i, OFF + W:OFF + W + 8, :] = zero_rows
        # Interior stores are sublane/lane aligned (OFF=8, W % 8 == 0, TH % 128 == 0).
        pad_ref[i, OFF:OFF + W, 0:TH] = avg
        pad_ref[i, OFF:OFF + W, TH:2 * TH] = mx

    # ---- build fused LHS: K shifted-W windows concatenated along the contraction -----
    # Destination slices are fully aligned (row offset i*W, lane offset dx*2*TH).
    for i in range(Bb):
        for dx in range(K):
            lhs_ref[i * W:(i + 1) * W, dx * 2 * TH:(dx + 1) * 2 * TH] = (
                pad_ref[i, OFF - P + dx:OFF - P + dx + W, :])

    # ---- one MXU contraction for the whole 3-D conv(2 -> 1) --------------------------
    acc = jnp.dot(lhs_ref[...], band_ref[...],
                  preferred_element_type=jnp.float32)          # (Bb*W, TH)

    o_ref[...] = jax.nn.sigmoid(acc).reshape(Bb, W, TH).astype(o_ref.dtype)


def _build_band(w, T, H, K, P):
    """w: (2, K, K, K) Conv3d weight indexed [in_ch, dT, dH, dW].

    Returns the fused band of shape (K*2*T*H, T*H) with
      band[dx*2*TH + c*TH + ts*H + ys, t*H + y] = w[c, ts - t + P, ys - y + P, dx]
    (0 where the offset falls outside the kernel -> implements zero padding in T/H)."""
    TH = T * H
    src = jnp.arange(TH)
    dst = jnp.arange(TH)
    ts, ys = src // H, src % H
    t, y = dst // H, dst % H
    dt = ts[:, None] - t[None, :] + P                 # (TH, TH)
    dy = ys[:, None] - y[None, :] + P
    valid = (dt >= 0) & (dt < K) & (dy >= 0) & (dy < K)
    dt_c = jnp.clip(dt, 0, K - 1)
    dy_c = jnp.clip(dy, 0, K - 1)
    wv = w[:, dt_c, dy_c, :]                          # (2, TH, TH, K)
    band = jnp.where(valid[None, :, :, None], wv, 0.0)
    band = jnp.transpose(band, (3, 0, 1, 2))          # (K, 2, TH, TH)
    # Row order dx-major, then channel, then source spatial index -> matches the LHS.
    return band.reshape(K * 2 * TH, TH).astype(jnp.float32)


def _pick_block_batch(B, max_bb=8):
    """Largest divisor of B <= max_bb that still leaves >= 2 grid steps (v7x megacore);
    falls back to the largest divisor <= max_bb (e.g. B == 1)."""
    cands = [bb for bb in range(1, min(B, max_bb) + 1) if B % bb == 0]
    two_steps = [bb for bb in cands if B // bb >= 2]
    return max(two_steps) if two_steps else max(cands)


def spatial_attention_pallas(x, w, *, block_batch=None):
    """x: (B, C, T, H, W) f32; w: (1, 2, K, K, K) Conv3d weight (OIDHW, bias=False).

    Returns sigmoid(Conv3d(cat([mean_C(x), max_C(x)], 1))) of shape (B, 1, T, H, W)."""
    B, C, T, H, W = x.shape
    K = w.shape[-1]
    P = (K - 1) // 2
    TH = T * H
    OFF = 8                                            # sublane-aligned interior offset (>= P)

    # Layout assumptions (BlockSpec (8,128) rule); other shapes would need padding.
    assert TH % 128 == 0, "T*H must be a multiple of 128 for the lane-dense layout"
    assert W % 8 == 0, "W must be a multiple of 8 for aligned sublane stores"

    Bb = block_batch if block_batch is not None else _pick_block_batch(B)
    assert B % Bb == 0

    # Lane-dense, channels-major layout: (B, C, W, T*H).
    # TODO: at production scale, move this relayout after the C-reduction (reduce over C
    # in native layout inside a kernel, then relay out only the 2-channel maps) to save
    # one full HBM read+write of x; negligible at demo shapes.
    xk = jnp.reshape(jnp.transpose(x, (0, 1, 4, 2, 3)), (B, C, W, TH)).astype(jnp.float32)
    band = _build_band(w[0].astype(jnp.float32), T, H, K, P)       # (K*2*TH, TH)
    # NOTE: for very large T*H (v7x, 64 MiB VMEM) the band's (T*H)^2 growth requires
    # single-buffering it (pipeline_mode=pl.Buffered(1)) and/or tiling its output axis
    # with a second grid dimension; at TH=128 it is only 896 KiB so the default is fine.

    kernel = functools.partial(_spatial_attention_kernel,
                               Bb=Bb, C=C, W=W, K=K, P=P, TH=TH, OFF=OFF)

    flops = 2 * B * W * (K * 2 * TH) * TH + 2 * B * C * W * TH
    bytes_accessed = 4 * (B * C * W * TH + K * 2 * TH * TH + B * W * TH)

    out = pl.pallas_call(
        kernel,
        out_shape=jax.ShapeDtypeStruct((B, W, TH), jnp.float32),
        grid=(B // Bb,),
        in_specs=[
            pl.BlockSpec((Bb, C, W, TH), lambda b: (b, 0, 0, 0)),
            pl.BlockSpec((K * 2 * TH, TH), lambda b: (0, 0)),      # constant across grid
        ],
        out_specs=pl.BlockSpec((Bb, W, TH), lambda b: (b, 0, 0)),
        scratch_shapes=[
            pltpu.VMEM((Bb, OFF + W + 8, 2 * TH), jnp.float32),    # padded [avg|max]
            pltpu.VMEM((Bb * W, K * 2 * TH), jnp.float32),         # fused matmul LHS
        ],
        compiler_params=pltpu.CompilerParams(
            dimension_semantics=("parallel",)),        # batch blocks are independent
        cost_estimate=pl.CostEstimate(flops=flops,
                                      transcendentals=B * W * TH,
                                      bytes_accessed=bytes_accessed),
    )(xk, band)

    # (B, W, T*H) -> (B, 1, T, H, W)
    return jnp.transpose(out.reshape(B, W, T, H), (0, 2, 3, 1))[:, None]


def _reference(x, w):
    """Pure-JAX reference matching the PyTorch forward semantics."""
    avg = jnp.mean(x, axis=1, keepdims=True)
    mx = jnp.max(x, axis=1, keepdims=True)
    s = jnp.concatenate([avg, mx], axis=1)            # (B, 2, T, H, W)
    y = jax.lax.conv_general_dilated(
        s, w, window_strides=(1, 1, 1), padding="SAME",
        dimension_numbers=("NCDHW", "OIDHW", "NCDHW"),
        precision=jax.lax.Precision.HIGHEST)
    return jax.nn.sigmoid(y)                          # (B, 1, T, H, W)


if __name__ == "__main__":
    # kernel_size=7 is the module default; T*H = 128 gives a fully lane-dense layout.
    # B=4 with block_batch=2 exercises both the M-batched matmul and a 2-step parallel grid.
    B, C, T, H, W, K = 4, 16, 8, 16, 16, 7

    key = jax.random.PRNGKey(0)
    kx, kw = jax.random.split(key)
    x = jax.random.normal(kx, (B, C, T, H, W), jnp.float32)
    # PyTorch Conv3d(2, 1, kernel_size=7, padding=3, bias=False) weight, OIDHW layout
    w = 0.1 * jax.random.normal(kw, (1, 2, K, K, K), jnp.float32)

    out = jax.block_until_ready(spatial_attention_pallas(x, w))
    assert out.shape == (B, 1, T, H, W)

    ref = _reference(x, w)
    err = float(jnp.max(jnp.abs(out - ref)))
    if err > 1e-3:
        raise AssertionError(f"Pallas output mismatch vs reference, max abs err = {err}")

    print("KERNEL_OK")
</pallas_src>

<mosaic_0001>
module attributes {stable_mosaic.version = 11 : i64} {
  func.func @_spatial_attention_kernel(%arg0: i32, %arg1: memref<2x16x16x128xf32, #tpu.memory_space<vmem>>, %arg2: memref<1792x128xf32, #tpu.memory_space<vmem>>, %arg3: memref<2x16x128xf32, #tpu.memory_space<vmem>>, %arg4: memref<2x32x256xf32, #tpu.memory_space<vmem>>, %arg5: memref<32x1792xf32, #tpu.memory_space<vmem>>) attributes {dimension_semantics = [#tpu.dimension_semantics<parallel>], iteration_bounds = array<i64: 2>, scalar_prefetch = 0 : i64, scratch_operands = 2 : i64, tpu.core_type = #tpu.core_type<tc>, window_params = [{transform_indices = @transform_0, window_bounds = array<i64: 2, 16, 16, 128>}, {pipeline_mode = #tpu.pipeline_mode<synchronous>, transform_indices = @transform_1, window_bounds = array<i64: 1792, 128>}, {transform_indices = @transform_2, window_bounds = array<i64: 2, 16, 128>}]} {
    %cst = arith.constant 0.000000e+00 : f32
    %0 = vector.broadcast %cst : f32 to vector<8x256xf32>
    %c0 = arith.constant 0 : index
    %c0_0 = arith.constant 0 : index
    %c0_1 = arith.constant 0 : index
    %c0_2 = arith.constant 0 : index
    %1 = vector.load %arg1[%c0, %c0_0, %c0_1, %c0_2] : memref<2x16x16x128xf32, #tpu.memory_space<vmem>>, vector<1x16x16x128xf32>
    %2 = vector.shape_cast %1 : vector<1x16x16x128xf32> to vector<16x16x128xf32>
    %cst_3 = arith.constant dense<0.000000e+00> : vector<16x128xf32>
    %3 = vector.multi_reduction <add>, %2, %cst_3 [0] : vector<16x16x128xf32> to vector<16x128xf32>
    %cst_4 = arith.constant 6.250000e-02 : f32
    %4 = vector.broadcast %cst_4 : f32 to vector<16x128xf32>
    %5 = arith.mulf %3, %4 : vector<16x128xf32>
    %cst_5 = arith.constant dense<0xFF800000> : vector<16x128xf32>
    %6 = vector.multi_reduction <maximumf>, %2, %cst_5 [0] : vector<16x16x128xf32> to vector<16x128xf32>
    %c0_6 = arith.constant 0 : index
    %c0_7 = arith.constant 0 : index
    %c0_8 = arith.constant 0 : index
    %7 = vector.load %arg4[%c0_6, %c0_7, %c0_8] : memref<2x32x256xf32, #tpu.memory_space<vmem>>, vector<1x8x256xf32>
    %8 = vector.shape_cast %7 : vector<1x8x256xf32> to vector<8x256xf32>
    %9 = vector.shape_cast %0 : vector<8x256xf32> to vector<1x8x256xf32>
    tpu.vector_store %arg4[%c0_6, %c0_7, %c0_8], %9 {strides = array<i32>} : memref<2x32x256xf32, #tpu.memory_space<vmem>>, vector<1x8x256xf32>,
    %c0_9 = arith.constant 0 : index
    %c24 = arith.constant 24 : index
    %c0_10 = arith.constant 0 : index
    %10 = vector.load %arg4[%c0_9, %c24, %c0_10] : memref<2x32x256xf32, #tpu.memory_space<vmem>>, vector<1x8x256xf32>
    %11 = vector.shape_cast %10 : vector<1x8x256xf32> to vector<8x256xf32>
    %12 = vector.shape_cast %0 : vector<8x256xf32> to vector<1x8x256xf32>
    tpu.vector_store %arg4[%c0_9, %c24, %c0_10], %12 {strides = array<i32>} : memref<2x32x256xf32, #tpu.memory_space<vmem>>, vector<1x8x256xf32>,
    %c0_11 = arith.constant 0 : index
    %c8 = arith.constant 8 : index
    %c0_12 = arith.constant 0 : index
    %13 = vector.load %arg4[%c0_11, %c8, %c0_12] : memref<2x32x256xf32, #tpu.memory_space<vmem>>, vector<1x16x128xf32>
    %14 = vector.shape_cast %13 : vector<1x16x128xf32> to vector<16x128xf32>
    %15 = vector.shape_cast %5 : vector<16x128xf32> to vector<1x16x128xf32>
    tpu.vector_store %arg4[%c0_11, %c8, %c0_12], %15 {strides = array<i32>} : memref<2x32x256xf32, #tpu.memory_space<vmem>>, vector<1x16x128xf32>,
    %c0_13 = arith.constant 0 : index
    %c8_14 = arith.constant 8 : index
    %c128 = arith.constant 128 : index
    %16 = vector.load %arg4[%c0_13, %c8_14, %c128] : memref<2x32x256xf32, #tpu.memory_space<vmem>>, vector<1x16x128xf32>
    %17 = vector.shape_cast %16 : vector<1x16x128xf32> to vector<16x128xf32>
    %18 = vector.shape_cast %6 : vector<16x128xf32> to vector<1x16x128xf32>
    tpu.vector_store %arg4[%c0_13, %c8_14, %c128], %18 {strides = array<i32>} : memref<2x32x256xf32, #tpu.memory_space<vmem>>, vector<1x16x128xf32>,
    %c1 = arith.constant 1 : index
    %c0_15 = arith.constant 0 : index
    %c0_16 = arith.constant 0 : index
    %c0_17 = arith.constant 0 : index
    %19 = vector.load %arg1[%c1, %c0_15, %c0_16, %c0_17] : memref<2x16x16x128xf32, #tpu.memory_space<vmem>>, vector<1x16x16x128xf32>
    %20 = vector.shape_cast %19 : vector<1x16x16x128xf32> to vector<16x16x128xf32>
    %cst_18 = arith.constant dense<0.000000e+00> : vector<16x128xf32>
    %21 = vector.multi_reduction <add>, %20, %cst_18 [0] : vector<16x16x128xf32> to vector<16x128xf32>
    %cst_19 = arith.constant 6.250000e-02 : f32
    %22 = vector.broadcast %cst_19 : f32 to vector<16x128xf32>
    %23 = arith.mulf %21, %22 : vector<16x128xf32>
    %cst_20 = arith.constant dense<0xFF800000> : vector<16x128xf32>
    %24 = vector.multi_reduction <maximumf>, %20, %cst_20 [0] : vector<16x16x128xf32> to vector<16x128xf32>
    %c1_21 = arith.constant 1 : index
    %c0_22 = arith.constant 0 : index
    %c0_23 = arith.constant 0 : index
    %25 = vector.load %arg4[%c1_21, %c0_22, %c0_23] : memref<2x32x256xf32, #tpu.memory_space<vmem>>, vector<1x8x256xf32>
    %26 = vector.shape_cast %25 : vector<1x8x256xf32> to vector<8x256xf32>
    %27 = vector.shape_cast %0 : vector<8x256xf32> to vector<1x8x256xf32>
    tpu.vector_store %arg4[%c1_21, %c0_22, %c0_23], %27 {strides = array<i32>} : memref<2x32x256xf32, #tpu.memory_space<vmem>>, vector<1x8x256xf32>,
    %c1_24 = arith.constant 1 : index
    %c24_25 = arith.constant 24 : index
    %c0_26 = arith.constant 0 : index
    %28 = vector.load %arg4[%c1_24, %c24_25, %c0_26] : memref<2x32x256xf32, #tpu.memory_space<vmem>>, vector<1x8x256xf32>
    %29 = vector.shape_cast %28 : vector<1x8x256xf32> to vector<8x256xf32>
    %30 = vector.shape_cast %0 : vector<8x256xf32> to vector<1x8x256xf32>
    tpu.vector_store %arg4[%c1_24, %c24_25, %c0_26], %30 {strides = array<i32>} : memref<2x32x256xf32, #tpu.memory_space<vmem>>, vector<1x8x256xf32>,
    %c1_27 = arith.constant 1 : index
    %c8_28 = arith.constant 8 : index
    %c0_29 = arith.constant 0 : index
    %31 = vector.load %arg4[%c1_27, %c8_28, %c0_29] : memref<2x32x256xf32, #tpu.memory_space<vmem>>, vector<1x16x128xf32>
    %32 = vector.shape_cast %31 : vector<1x16x128xf32> to vector<16x128xf32>
    %33 = vector.shape_cast %23 : vector<16x128xf32> to vector<1x16x128xf32>
    tpu.vector_store %arg4[%c1_27, %c8_28, %c0_29], %33 {strides = array<i32>} : memref<2x32x256xf32, #tpu.memory_space<vmem>>, vector<1x16x128xf32>,
    %c1_30 = arith.constant 1 : index
    %c8_31 = arith.constant 8 : index
    %c128_32 = arith.constant 128 : index
    %34 = vector.load %arg4[%c1_30, %c8_31, %c128_32] : memref<2x32x256xf32, #tpu.memory_space<vmem>>, vector<1x16x128xf32>
    %35 = vector.shape_cast %34 : vector<1x16x128xf32> to vector<16x128xf32>
    %36 = vector.shape_cast %24 : vector<16x128xf32> to vector<1x16x128xf32>
    tpu.vector_store %arg4[%c1_30, %c8_31, %c128_32], %36 {strides = array<i32>} : memref<2x32x256xf32, #tpu.memory_space<vmem>>, vector<1x16x128xf32>,
    %c0_33 = arith.constant 0 : index
    %c5 = arith.constant 5 : index
    %c0_34 = arith.constant 0 : index
    %37 = vector.load %arg4[%c0_33, %c5, %c0_34] : memref<2x32x256xf32, #tpu.memory_space<vmem>>, vector<1x16x256xf32>
    %38 = vector.shape_cast %37 : vector<1x16x256xf32> to vector<16x256xf32>
    %c0_35 = arith.constant 0 : index
    %c0_36 = arith.constant 0 : index
    %39 = vector.load %arg5[%c0_35, %c0_36] : memref<32x1792xf32, #tpu.memory_space<vmem>>, vector<16x256xf32>
    tpu.vector_store %arg5[%c0_35, %c0_36], %38 {strides = array<i32>} : memref<32x1792xf32, #tpu.memory_space<vmem>>, vector<16x256xf32>,
    %c0_37 = arith.constant 0 : index
    %c6 = arith.constant 6 : index
    %c0_38 = arith.constant 0 : index
    %40 = vector.load %arg4[%c0_37, %c6, %c0_38] : memref<2x32x256xf32, #tpu.memory_space<vmem>>, vector<1x16x256xf32>
    %41 = vector.shape_cast %40 : vector<1x16x256xf32> to vector<16x256xf32>
    %c0_39 = arith.constant 0 : index
    %c256 = arith.constant 256 : index
    %42 = vector.load %arg5[%c0_39, %c256] : memref<32x1792xf32, #tpu.memory_space<vmem>>, vector<16x256xf32>
    tpu.vector_store %arg5[%c0_39, %c256], %41 {strides = array<i32>} : memref<32x1792xf32, #tpu.memory_space<vmem>>, vector<16x256xf32>,
    %c0_40 = arith.constant 0 : index
    %c7 = arith.constant 7 : index
    %c0_41 = arith.constant 0 : index
    %43 = vector.load %arg4[%c0_40, %c7, %c0_41] : memref<2x32x256xf32, #tpu.memory_space<vmem>>, vector<1x16x256xf32>
    %44 = vector.shape_cast %43 : vector<1x16x256xf32> to vector<16x256xf32>
    %c0_42 = arith.constant 0 : index
    %c512 = arith.constant 512 : index
    %45 = vector.load %arg5[%c0_42, %c512] : memref<32x1792xf32, #tpu.memory_space<vmem>>, vector<16x256xf32>
    tpu.vector_store %arg5[%c0_42, %c512], %44 {strides = array<i32>} : memref<32x1792xf32, #tpu.memory_space<vmem>>, vector<16x256xf32>,
    %c0_43 = arith.constant 0 : index
    %c8_44 = arith.constant 8 : index
    %c0_45 = arith.constant 0 : index
    %46 = vector.load %arg4[%c0_43, %c8_44, %c0_45] : memref<2x32x256xf32, #tpu.memory_space<vmem>>, vector<1x16x256xf32>
    %47 = vector.shape_cast %46 : vector<1x16x256xf32> to vector<16x256xf32>
    %c0_46 = arith.constant 0 : index
    %c768 = arith.constant 768 : index
    %48 = vector.load %arg5[%c0_46, %c768] : memref<32x1792xf32, #tpu.memory_space<vmem>>, vector<16x256xf32>
    tpu.vector_store %arg5[%c0_46, %c768], %47 {strides = array<i32>} : memref<32x1792xf32, #tpu.memory_space<vmem>>, vector<16x256xf32>,
    %c0_47 = arith.constant 0 : index
    %c9 = arith.constant 9 : index
    %c0_48 = arith.constant 0 : index
    %49 = vector.load %arg4[%c0_47, %c9, %c0_48] : memref<2x32x256xf32, #tpu.memory_space<vmem>>, vector<1x16x256xf32>
    %50 = vector.shape_cast %49 : vector<1x16x256xf32> to vector<16x256xf32>
    %c0_49 = arith.constant 0 : index
    %c1024 = arith.constant 1024 : index
    %51 = vector.load %arg5[%c0_49, %c1024] : memref<32x1792xf32, #tpu.memory_space<vmem>>, vector<16x256xf32>
    tpu.vector_store %arg5[%c0_49, %c1024], %50 {strides = array<i32>} : memref<32x1792xf32, #tpu.memory_space<vmem>>, vector<16x256xf32>,
    %c0_50 = arith.constant 0 : index
    %c10 = arith.constant 10 : index
    %c0_51 = arith.constant 0 : index
    %52 = vector.load %arg4[%c0_50, %c10, %c0_51] : memref<2x32x256xf32, #tpu.memory_space<vmem>>, vector<1x16x256xf32>
    %53 = vector.shape_cast %52 : vector<1x16x256xf32> to vector<16x256xf32>
    %c0_52 = arith.constant 0 : index
    %c1280 = arith.constant 1280 : index
    %54 = vector.load %arg5[%c0_52, %c1280] : memref<32x1792xf32, #tpu.memory_space<vmem>>, vector<16x256xf32>
    tpu.vector_store %arg5[%c0_52, %c1280], %53 {strides = array<i32>} : memref<32x1792xf32, #tpu.memory_space<vmem>>, vector<16x256xf32>,
    %c0_53 = arith.constant 0 : index
    %c11 = arith.constant 11 : index
    %c0_54 = arith.constant 0 : index
    %55 = vector.load %arg4[%c0_53, %c11, %c0_54] : memref<2x32x256xf32, #tpu.memory_space<vmem>>, vector<1x16x256xf32>
    %56 = vector.shape_cast %55 : vector<1x16x256xf32> to vector<16x256xf32>
    %c0_55 = arith.constant 0 : index
    %c1536 = arith.constant 1536 : index
    %57 = vector.load %arg5[%c0_55, %c1536] : memref<32x1792xf32, #tpu.memory_space<vmem>>, vector<16x256xf32>
    tpu.vector_store %arg5[%c0_55, %c1536], %56 {strides = array<i32>} : memref<32x1792xf32, #tpu.memory_space<vmem>>, vector<16x256xf32>,
    %c1_56 = arith.constant 1 : index
    %c5_57 = arith.constant 5 : index
    %c0_58 = arith.constant 0 : index
    %58 = vector.load %arg4[%c1_56, %c5_57, %c0_58] : memref<2x32x256xf32, #tpu.memory_space<vmem>>, vector<1x16x256xf32>
    %59 = vector.shape_cast %58 : vector<1x16x256xf32> to vector<16x256xf32>
    %c16 = arith.constant 16 : index
    %c0_59 = arith.constant 0 : index
    %60 = vector.load %arg5[%c16, %c0_59] : memref<32x1792xf32, #tpu.memory_space<vmem>>, vector<16x256xf32>
    tpu.vector_store %arg5[%c16, %c0_59], %59 {strides = array<i32>} : memref<32x1792xf32, #tpu.memory_space<vmem>>, vector<16x256xf32>,
    %c1_60 = arith.constant 1 : index
    %c6_61 = arith.constant 6 : index
    %c0_62 = arith.constant 0 : index
    %61 = vector.load %arg4[%c1_60, %c6_61, %c0_62] : memref<2x32x256xf32, #tpu.memory_space<vmem>>, vector<1x16x256xf32>
    %62 = vector.shape_cast %61 : vector<1x16x256xf32> to vector<16x256xf32>
    %c16_63 = arith.constant 16 : index
    %c256_64 = arith.constant 256 : index
    %63 = vector.load %arg5[%c16_63, %c256_64] : memref<32x1792xf32, #tpu.memory_space<vmem>>, vector<16x256xf32>
    tpu.vector_store %arg5[%c16_63, %c256_64], %62 {strides = array<i32>} : memref<32x1792xf32, #tpu.memory_space<vmem>>, vector<16x256xf32>,
    %c1_65 = arith.constant 1 : index
    %c7_66 = arith.constant 7 : index
    %c0_67 = arith.constant 0 : index
    %64 = vector.load %arg4[%c1_65, %c7_66, %c0_67] : memref<2x32x256xf32, #tpu.memory_space<vmem>>, vector<1x16x256xf32>
    %65 = vector.shape_cast %64 : vector<1x16x256xf32> to vector<16x256xf32>
    %c16_68 = arith.constant 16 : index
    %c512_69 = arith.constant 512 : index
    %66 = vector.load %arg5[%c16_68, %c512_69] : memref<32x1792xf32, #tpu.memory_space<vmem>>, vector<16x256xf32>
    tpu.vector_store %arg5[%c16_68, %c512_69], %65 {strides = array<i32>} : memref<32x1792xf32, #tpu.memory_space<vmem>>, vector<16x256xf32>,
    %c1_70 = arith.constant 1 : index
    %c8_71 = arith.constant 8 : index
    %c0_72 = arith.constant 0 : index
    %67 = vector.load %arg4[%c1_70, %c8_71, %c0_72] : memref<2x32x256xf32, #tpu.memory_space<vmem>>, vector<1x16x256xf32>
    %68 = vector.shape_cast %67 : vector<1x16x256xf32> to vector<16x256xf32>
    %c16_73 = arith.constant 16 : index
    %c768_74 = arith.constant 768 : index
    %69 = vector.load %arg5[%c16_73, %c768_74] : memref<32x1792xf32, #tpu.memory_space<vmem>>, vector<16x256xf32>
    tpu.vector_store %arg5[%c16_73, %c768_74], %68 {strides = array<i32>} : memref<32x1792xf32, #tpu.memory_space<vmem>>, vector<16x256xf32>,
    %c1_75 = arith.constant 1 : index
    %c9_76 = arith.constant 9 : index
    %c0_77 = arith.constant 0 : index
    %70 = vector.load %arg4[%c1_75, %c9_76, %c0_77] : memref<2x32x256xf32, #tpu.memory_space<vmem>>, vector<1x16x256xf32>
    %71 = vector.shape_cast %70 : vector<1x16x256xf32> to vector<16x256xf32>
    %c16_78 = arith.constant 16 : index
    %c1024_79 = arith.constant 1024 : index
    %72 = vector.load %arg5[%c16_78, %c1024_79] : memref<32x1792xf32, #tpu.memory_space<vmem>>, vector<16x256xf32>
    tpu.vector_store %arg5[%c16_78, %c1024_79], %71 {strides = array<i32>} : memref<32x1792xf32, #tpu.memory_space<vmem>>, vector<16x256xf32>,
    %c1_80 = arith.constant 1 : index
    %c10_81 = arith.constant 10 : index
    %c0_82 = arith.constant 0 : index
    %73 = vector.load %arg4[%c1_80, %c10_81, %c0_82] : memref<2x32x256xf32, #tpu.memory_space<vmem>>, vector<1x16x256xf32>
    %74 = vector.shape_cast %73 : vector<1x16x256xf32> to vector<16x256xf32>
    %c16_83 = arith.constant 16 : index
    %c1280_84 = arith.constant 1280 : index
    %75 = vector.load %arg5[%c16_83, %c1280_84] : memref<32x1792xf32, #tpu.memory_space<vmem>>, vector<16x256xf32>
    tpu.vector_store %arg5[%c16_83, %c1280_84], %74 {strides = array<i32>} : memref<32x1792xf32, #tpu.memory_space<vmem>>, vector<16x256xf32>,
    %c1_85 = arith.constant 1 : index
    %c11_86 = arith.constant 11 : index
    %c0_87 = arith.constant 0 : index
    %76 = vector.load %arg4[%c1_85, %c11_86, %c0_87] : memref<2x32x256xf32, #tpu.memory_space<vmem>>, vector<1x16x256xf32>
    %77 = vector.shape_cast %76 : vector<1x16x256xf32> to vector<16x256xf32>
    %c16_88 = arith.constant 16 : index
    %c1536_89 = arith.constant 1536 : index
    %78 = vector.load %arg5[%c16_88, %c1536_89] : memref<32x1792xf32, #tpu.memory_space<vmem>>, vector<16x256xf32>
    tpu.vector_store %arg5[%c16_88, %c1536_89], %77 {strides = array<i32>} : memref<32x1792xf32, #tpu.memory_space<vmem>>, vector<16x256xf32>,
    %c0_90 = arith.constant 0 : index
    %c0_91 = arith.constant 0 : index
    %79 = vector.load %arg5[%c0_90, %c0_91] : memref<32x1792xf32, #tpu.memory_space<vmem>>, vector<32x1792xf32>
    %c0_92 = arith.constant 0 : index
    %c0_93 = arith.constant 0 : index
    %80 = vector.load %arg2[%c0_92, %c0_93] : memref<1792x128xf32, #tpu.memory_space<vmem>>, vector<1792x128xf32>
    %cst_94 = arith.constant dense<0.000000e+00> : vector<32x128xf32>
    %81 = tpu.matmul %79, %80, %cst_94 {dimension_numbers = #tpu.dot_dimension_numbers<[1], [0], [0], [1], [0, 0, 1, 1], [], []>} : vector<32x1792xf32>, vector<1792x128xf32>, vector<32x128xf32> -> vector<32x128xf32>
    %82 = arith.negf %81 : vector<32x128xf32>
    %83 = math.exp %82 : vector<32x128xf32>
    %cst_95 = arith.constant 1.000000e+00 : f32
    %84 = vector.broadcast %cst_95 : f32 to vector<32x128xf32>
    %85 = arith.addf %84, %83 : vector<32x128xf32>
    %86 = arith.divf %84, %85 : vector<32x128xf32>
    %87 = vector.shape_cast %86 : vector<32x128xf32> to vector<2x16x128xf32>
    %c0_96 = arith.constant 0 : index
    %c0_97 = arith.constant 0 : index
    %c0_98 = arith.constant 0 : index
    %88 = vector.load %arg3[%c0_96, %c0_97, %c0_98] : memref<2x16x128xf32, #tpu.memory_space<vmem>>, vector<2x16x128xf32>
    tpu.vector_store %arg3[%c0_96, %c0_97, %c0_98], %87 {strides = array<i32>} : memref<2x16x128xf32, #tpu.memory_space<vmem>>, vector<2x16x128xf32>,
    return
  }
  func.func @transform_0(%arg0: i32) -> (i32, i32, i32, i32) {
    %c0_i32 = arith.constant 0 : i32
    %c0_i32_0 = arith.constant 0 : i32
    %c0_i32_1 = arith.constant 0 : i32
    %c0_i32_2 = arith.constant 0 : i32
    return %arg0, %c0_i32, %c0_i32_0, %c0_i32_1 : i32, i32, i32, i32
  }
  func.func @transform_1(%arg0: i32) -> (i32, i32) {
    %c0_i32 = arith.constant 0 : i32
    %c0_i32_0 = arith.constant 0 : i32
    %c0_i32_1 = arith.constant 0 : i32
    return %c0_i32, %c0_i32_0 : i32, i32
  }
  func.func @transform_2(%arg0: i32) -> (i32, i32, i32) {
    %c0_i32 = arith.constant 0 : i32
    %c0_i32_0 = arith.constant 0 : i32
    %c0_i32_1 = arith.constant 0 : i32
    return %arg0, %c0_i32, %c0_i32_0 : i32, i32, i32
  }
}

</mosaic_0001>

<llo_original>
// kernel: tpu_custom_call.1
$region0: #{tpu_custom_call.1}
  #allocation0 [shape = 'u32[]', space=smem, size = 0x4, offset = 0x4, fixed_abs, tag = 'smem constant byte address 0x4 - core index']
  #allocation1 [shape = 'u32[144,128]{1,0:T(1,128)}', space=vmem, size = 0x12000, scoped, tag = 'internal scratch']
  #allocation2 [shape = 'f32[2,32,256]{2,1,0:T(8,128)}', space=vmem, size = 0x10000, scoped, tag = 'scratch operand']
  #allocation3 [shape = 'f32[32,1792]{1,0:T(8,128)}', space=vmem, size = 0x38000, scoped, tag = 'scratch operand']
  %s0 = inlined_call_operand.hbm [shape: f32[4,16,16,128], index: 0, kind: input, shape index: {}]
  %s1 = inlined_call_operand.hbm [shape: f32[1792,128], index: 1, kind: input, shape index: {}]
  %s2 = inlined_call_operand.hbm [shape: f32[4,16,128], index: 2, kind: output, shape index: {}]
  %s3 = sld [smem:[#allocation0]]
  $region49: #{tpu_custom_call.1} parent=0
    _
  %s5 = ssub.s32 1, %s3
  %s6 = scalar_select 0, %s5, %s3
  $region1: #{tpu_custom_call.1} parent=0
    #allocation4 [shape = 'u8[524288]{0}', space=vmem, size = 0x80000, scoped, tag = 'input window, operand 0']
    #allocation5 [shape = 's32[2]{0}', space=sflag, size = 0x8, scoped, tag = 'scoped memory for tpu_custom_call.1']
    #allocation6 [shape = 's32[2]{0}', space=sflag, size = 0x8, scoped, tag = 'scoped memory for tpu_custom_call.1']
    #allocation7 [shape = 'u8[917504]{0}', space=vmem, size = 0xe0000, scoped, tag = 'input window, operand 1, single buffered']
    #allocation8 [shape = 's32[1]{0}', space=sflag, size = 0x4, scoped, tag = 'scoped memory for tpu_custom_call.1']
    #allocation9 [shape = 'u8[32768]{0}', space=vmem, size = 0x8000, scoped, tag = 'output window, operand 0']
    %7 = vsyncpa [#allocation5], 0
    %s8 = scalar_lea.sflag [#allocation5], 1
    %9 = vsyncpa %s8, 0
    %10 = vsyncpa [#allocation8], 0
    %11 = vsyncpa [#allocation6], 0
    %s12 = scalar_lea.sflag [#allocation6], 1
    %13 = vsyncpa %s12, 0
    loop: start=0, step=1, limit=4
    $region2: #{tpu_custom_call.1} parent=1 // loop_pre_header
      _
    $region3: #{tpu_custom_call.1} parent=1 // loop_header
      %s15 = sphi 0, %s19
      %p16 = scmp.ge.s32.totalorder %s15, 4
      %s25 = sphi 0, %s27
      %s28 = sphi 0, %s25
      %s29 = sphi 0, %s28
      %s45 = sphi 0, %s29
      %s49 = sphi 0, %s49
      %s51 = sphi 0, %s49
      %s52 = sphi 0, %s51
      %s66 = sphi 0, %s52
      %s72 = sphi 0, %s74
      %s75 = sphi 0, %s72
      %s76 = sphi 0, %s75
      %s92 = sphi 0, %s76
    $region4: #{tpu_custom_call.1} parent=1 // loop_header_branch
      %18 = sbr.rel (%p16) target = $region8
    $region5: #{tpu_custom_call.1} parent=1 // loop_body
      %s20 = ssub.s32 %s15, 1
      %s21 = ssub.s32 %s15, 2
      %s22 = sadd.s32 %s15, 1
      %s23 = ssub.s32 %s15, %s22
      %p24 = scmp.eq.s32.totalorder %s23, 0
      %s26 = sadd.s32 %s25, 1
      %s27 = scalar_select %p24, %s25, %s26
      %p30 = pneg %p24
      %p31 = scmp.eq.s32.totalorder %s15, 1
      %p32 = por %p30, %p31
      %p33 = scmp.ne.s32.totalorder %s25, %s28
      %p34 = scmp.eq.s32.totalorder %s15, 0
      %p35 = por %p33, %p34
      %p36 = scmp.ne.s32.totalorder %s25, %s28
      %p37 = scmp.eq.s32.totalorder %s20, 1
      %p38 = por %p36, %p37
      %p39 = scmp.ne.s32.totalorder %s28, %s29
      %p40 = scmp.eq.s32.totalorder %s20, 0
      %p41 = por %p39, %p40
      %p42 = scmp.ne.s32.totalorder %s28, %s29
      %p43 = scmp.eq.s32.totalorder %s21, 1
      %p44 = por %p42, %p43
      %p46 = scmp.ne.s32.totalorder %s29, %s45
      %p47 = scmp.eq.s32.totalorder %s21, 0
      %p48 = por %p46, %p47
      %s50 = sadd.s32 %s49, 1
      %p53 = scmp.eq.s32.totalorder %s15, 1
      %p54 = scmp.ne.s32.totalorder %s49, %s51
      %p55 = scmp.eq.s32.totalorder %s15, 0
      %p56 = por %p54, %p55
      %p57 = scmp.ne.s32.totalorder %s49, %s51
      %p58 = scmp.eq.s32.totalorder %s20, 1
      %p59 = por %p57, %p58
      %p60 = scmp.ne.s32.totalorder %s51, %s52
      %p61 = scmp.eq.s32.totalorder %s20, 0
      %p62 = por %p60, %p61
      %p63 = scmp.ne.s32.totalorder %s51, %s52
      %p64 = scmp.eq.s32.totalorder %s21, 1
      %p65 = por %p63, %p64
      %p67 = scmp.ne.s32.totalorder %s52, %s66
      %p68 = scmp.eq.s32.totalorder %s21, 0
      %p69 = por %p67, %p68
      %s70 = ssub.s32 %s15, %s22
      %p71 = scmp.eq.s32.totalorder %s70, 0
      %s73 = sadd.s32 %s72, 1
      %s74 = scalar_select %p71, %s72, %s73
      %p77 = pneg %p71
      %p78 = scmp.eq.s32.totalorder %s15, 1
      %p79 = por %p77, %p78
      %p80 = scmp.ne.s32.totalorder %s72, %s75
      %p81 = scmp.eq.s32.totalorder %s15, 0
      %p82 = por %p80, %p81
      %p83 = scmp.ne.s32.totalorder %s72, %s75
      %p84 = scmp.eq.s32.totalorder %s20, 1
      %p85 = por %p83, %p84
      %p86 = scmp.ne.s32.totalorder %s75, %s76
      %p87 = scmp.eq.s32.totalorder %s20, 0
      %p88 = por %p86, %p87
      %p89 = scmp.ne.s32.totalorder %s75, %s76
      %p90 = scmp.eq.s32.totalorder %s21, 1
      %p91 = por %p89, %p90
      %p93 = scmp.ne.s32.totalorder %s76, %s92
      %p94 = scmp.eq.s32.totalorder %s21, 0
      %p95 = por %p93, %p94
      %p96 = scmp.le.s32.totalorder 1, %s15
      %p97 = scmp.lt.s32.totalorder %s15, 3
      %p98 = pnand %p96, %p97
      %p99 = pneg %p98
      // Predicated region
      $region9: #{tpu_custom_call.1} parent=5 // pred_check
        _
      $region10: #{tpu_custom_call.1} parent=5 // pred_check_branch
        %101 = sbr.rel (%p98) target = $region12
      $region11: #{tpu_custom_call.1} parent=5 // pred_region
        %s102 = ssub.s32 %s15, 1
        // Predicated region
        $region13: #{tpu_custom_call.1} parent=11 // pred_check
          %p103 = pneg %p62
        $region14: #{tpu_custom_call.1} parent=11 // pred_check_branch
          %105 = sbr.rel (%p103) target = $region16
        $region15: #{tpu_custom_call.1} parent=11 // pred_region
          %s107 = ssub.s32 28672, 28672
          %108 = vsyncadd [#allocation8], %s107
          %s109 = sshll.u32 [#allocation7], 4
          %s110 = int_to_ptr.vmem [resolvable:$true] %s109
          %115 = dma.hbm_to_vmem [thread:$0]  %s1, 28672, %s110, [#allocation8], 128, 128, 8
        $region16: #{tpu_custom_call.1} parent=11 // pred_fallthru
          _
      $region12: #{tpu_custom_call.1} parent=5 // pred_fallthru
        _
      %p116 = scmp.lt.s32.totalorder %s15, 2
      // Predicated region
      $region17: #{tpu_custom_call.1} parent=5 // pred_check
        %p117 = pneg %p116
      $region18: #{tpu_custom_call.1} parent=5 // pred_check_branch
        %119 = sbr.rel (%p117) target = $region20
      $region19: #{tpu_custom_call.1} parent=5 // pred_region
        // Predicated region
        $region21: #{tpu_custom_call.1} parent=19 // pred_check
          %p120 = pneg %p35
        $region22: #{tpu_custom_call.1} parent=19 // pred_check_branch
          %122 = sbr.rel (%p120) target = $region24
        $region23: #{tpu_custom_call.1} parent=19 // pred_region
          %s123 = sand.u32 %s25, 1
          %s124 = scalar_lea.sflag [#allocation5], %s123
          %s125 = sand.u32 %s25, 1
          %s126 = smul.addr %s125, 512
          %s127 = scalar_lea.vmem [#allocation4], %s126
          %s128 = smul.u32 2, %s15
          %s130 = ssub.s32 8192, 8192
          %131 = vsyncadd %s124, %s130
          %s132 = smul.addr %s128, 32
          %s133 = smul.addr %s132, 128
          %s134 = scalar_lea.hbm %s0, %s133
          %s135 = sshll.u32 %s127, 4
          %s136 = int_to_ptr.vmem [resolvable:$true] %s135
          %141 = dma.hbm_to_vmem [thread:$0]  %s134, 8192, %s136, %s124, 128, 128, 8
        $region24: #{tpu_custom_call.1} parent=19 // pred_fallthru
          _
      $region20: #{tpu_custom_call.1} parent=5 // pred_fallthru
        _
      %p142 = scmp.le.s32.totalorder 1, %s15
      %p143 = scmp.lt.s32.totalorder %s15, 3
      %p144 = pnand %p142, %p143
      %p145 = pneg %p144
      // Predicated region
      $region25: #{tpu_custom_call.1} parent=5 // pred_check
        _
      $region26: #{tpu_custom_call.1} parent=5 // pred_check_branch
        %147 = sbr.rel (%p144) target = $region28
      $region27: #{tpu_custom_call.1} parent=5 // pred_region
        %s148 = ssub.s32 %s15, 1
        %s149 = sand.u32 %s28, 1
        %s150 = scalar_lea.sflag [#allocation5], %s149
        %s151 = sand.u32 %s28, 1
        %s152 = smul.addr %s151, 512
        %s153 = scalar_lea.vmem [#allocation4], %s152
        // Predicated region
        $region29: #{tpu_custom_call.1} parent=27 // pred_check
          %p154 = pneg %p41
        $region30: #{tpu_custom_call.1} parent=27 // pred_check_branch
          %156 = sbr.rel (%p154) target = $region32
        $region31: #{tpu_custom_call.1} parent=27 // pred_region
          %157 = dma.done %s150, 8192
        $region32: #{tpu_custom_call.1} parent=27 // pred_fallthru
          _
        // Predicated region
        $region33: #{tpu_custom_call.1} parent=27 // pred_check
          %p158 = pneg %p62
        $region34: #{tpu_custom_call.1} parent=27 // pred_check_branch
          %160 = sbr.rel (%p158) target = $region36
        $region35: #{tpu_custom_call.1} parent=27 // pred_region
          %161 = dma.done [#allocation8], 28672
        $region36: #{tpu_custom_call.1} parent=27 // pred_fallthru
          _
        %s162 = sand.u32 %s28, 1
        %s163 = scalar_lea.sflag [#allocation5], %s162
        %s164 = sand.u32 %s28, 1
        %s165 = smul.addr %s164, 512
        %s166 = scalar_lea.vmem [#allocation4], %s165
        %p167 = pneg %p41
        %p168 = pneg %p38
        %p169 = pneg %p62
        %p170 = pneg %p59
        %p171 = pneg %p88
        %p172 = pneg %p85
        %s173 = sand.u32 %s75, 1
        %s174 = scalar_lea.sflag [#allocation6], %s173
        %s175 = sand.u32 %s75, 1
        %s176 = smul.addr %s175, 32
        %s177 = scalar_lea.vmem [#allocation9], %s176
        %s178 = smul.u32 2, %s20
        %s179 = smul.u32 2, %s20
        %v180 = vld [vmem:[%s153] sm:$0xff]
        %v181 = vld [vmem:[%s153 + $0x8] sm:$0xff]
        %v182 = vld [vmem:[%s153 + $0x10] sm:$0xff]
        %v183 = vld [vmem:[%s153 + $0x18] sm:$0xff]
        %v184 = vld [vmem:[%s153 + $0x20] sm:$0xff]
        %v185 = vld [vmem:[%s153 + $0x28] sm:$0xff]
        %v186 = vld [vmem:[%s153 + $0x30] sm:$0xff]
        %v187 = vld [vmem:[%s153 + $0x38] sm:$0xff]
        %v188 = vld [vmem:[%s153 + $0x40] sm:$0xff]
        %v189 = vld [vmem:[%s153 + $0x48] sm:$0xff]
        %v190 = vld [vmem:[%s153 + $0x50] sm:$0xff]
        %v191 = vld [vmem:[%s153 + $0x58] sm:$0xff]
        %v192 = vld [vmem:[%s153 + $0x60] sm:$0xff]
        %v193 = vld [vmem:[%s153 + $0x68] sm:$0xff]
        %v194 = vld [vmem:[%s153 + $0x70] sm:$0xff]
        %v195 = vld [vmem:[%s153 + $0x78] sm:$0xff]
        %v196 = vld [vmem:[%s153 + $0x80] sm:$0xff]
        %v197 = vld [vmem:[%s153 + $0x88] sm:$0xff]
        %v198 = vld [vmem:[%s153 + $0x90] sm:$0xff]
        %v199 = vld [vmem:[%s153 + $0x98] sm:$0xff]
        %v200 = vld [vmem:[%s153 + $0xa0] sm:$0xff]
        %v201 = vld [vmem:[%s153 + $0xa8] sm:$0xff]
        %v202 = vld [vmem:[%s153 + $0xb0] sm:$0xff]
        %v203 = vld [vmem:[%s153 + $0xb8] sm:$0xff]
        %v204 = vld [vmem:[%s153 + $0xc0] sm:$0xff]
        %v205 = vld [vmem:[%s153 + $0xc8] sm:$0xff]
        %v206 = vld [vmem:[%s153 + $0xd0] sm:$0xff]
        %v207 = vld [vmem:[%s153 + $0xd8] sm:$0xff]
        %v208 = vld [vmem:[%s153 + $0xe0] sm:$0xff]
        %v209 = vld [vmem:[%s153 + $0xe8] sm:$0xff]
        %v210 = vld [vmem:[%s153 + $0xf0] sm:$0xff]
        %v211 = vld [vmem:[%s153 + $0xf8] sm:$0xff]
        %v212 = vadd.f32 %v180, %v182
        %v213 = vadd.f32 %v212, %v184
        %v214 = vadd.f32 %v213, %v186
        %v215 = vadd.f32 %v214, %v188
        %v216 = vadd.f32 %v215, %v190
        %v217 = vadd.f32 %v216, %v192
        %v218 = vadd.f32 %v217, %v194
        %v219 = vadd.f32 %v218, %v196
        %v220 = vadd.f32 %v219, %v198
        %v221 = vadd.f32 %v220, %v200
        %v222 = vadd.f32 %v221, %v202
        %v223 = vadd.f32 %v222, %v204
        %v224 = vadd.f32 %v223, %v206
        %v225 = vadd.f32 %v224, %v208
        %v226 = vadd.f32 %v225, %v210
        %v227 = vadd.f32 %v181, %v183
        %v228 = vadd.f32 %v227, %v185
        %v229 = vadd.f32 %v228, %v187
        %v230 = vadd.f32 %v229, %v189
        %v231 = vadd.f32 %v230, %v191
        %v232 = vadd.f32 %v231, %v193
        %v233 = vadd.f32 %v232, %v195
        %v234 = vadd.f32 %v233, %v197
        %v235 = vadd.f32 %v234, %v199
        %v236 = vadd.f32 %v235, %v201
        %v237 = vadd.f32 %v236, %v203
        %v238 = vadd.f32 %v237, %v205
        %v239 = vadd.f32 %v238, %v207
        %v240 = vadd.f32 %v239, %v209
        %v241 = vadd.f32 %v240, %v211
        %v242 = vmul.f32 %v226, 0.0625
        %v243 = vmul.f32 %v241, 0.0625
        %v244 = vmax.f32 %v180, %v184
        %v245 = vmax.f32 %v182, %v186
        %v246 = vmax.f32 %v244, %v188
        %v247 = vmax.f32 %v245, %v190
        %v248 = vmax.f32 %v246, %v192
        %v249 = vmax.f32 %v247, %v194
        %v250 = vmax.f32 %v248, %v196
        %v251 = vmax.f32 %v249, %v198
        %v252 = vmax.f32 %v250, %v200
        %v253 = vmax.f32 %v251, %v202
        %v254 = vmax.f32 %v252, %v204
        %v255 = vmax.f32 %v253, %v206
        %v256 = vmax.f32 %v254, %v208
        %v257 = vmax.f32 %v255, %v210
        %v258 = vmax.f32 %v256, %v257
        %v259 = vmax.f32 %v181, %v185
        %v260 = vmax.f32 %v183, %v187
        %v261 = vmax.f32 %v259, %v189
        %v262 = vmax.f32 %v260, %v191
        %v263 = vmax.f32 %v261, %v193
        %v264 = vmax.f32 %v262, %v195
        %v265 = vmax.f32 %v263, %v197
        %v266 = vmax.f32 %v264, %v199
        %v267 = vmax.f32 %v265, %v201
        %v268 = vmax.f32 %v266, %v203
        %v269 = vmax.f32 %v267, %v205
        %v270 = vmax.f32 %v268, %v207
        %v271 = vmax.f32 %v269, %v209
        %v272 = vmax.f32 %v270, %v211
        %v273 = vmax.f32 %v271, %v272
        %274 = vst [vmem:[#allocation2] sm:$0xff] 0.0
        %275 = vst [vmem:[#allocation2 + $0x8] sm:$0xff] 0.0
        %276 = vst [vmem:[#allocation2 + $0x30] sm:$0xff] 0.0
        %277 = vst [vmem:[#allocation2 + $0x38] sm:$0xff] 0.0
        %278 = vst [vmem:[#allocation2 + $0x10] sm:$0xff] %v242
        %279 = vst [vmem:[#allocation2 + $0x20] sm:$0xff] %v243
        %280 = vst [vmem:[#allocation2 + $0x18] sm:$0xff] %v258
        %281 = vst [vmem:[#allocation2 + $0x28] sm:$0xff] %v273
        %s282 = scalar_lea.vmem %s153, 256 [#allocation4]
        %v283 = vld [vmem:[%s282] sm:$0xff]
        %v284 = vld [vmem:[%s282 + $0x8] sm:$0xff]
        %v285 = vld [vmem:[%s282 + $0x10] sm:$0xff]
        %v286 = vld [vmem:[%s282 + $0x18] sm:$0xff]
        %v287 = vld [vmem:[%s282 + $0x20] sm:$0xff]
        %v288 = vld [vmem:[%s282 + $0x28] sm:$0xff]
        %v289 = vld [vmem:[%s282 + $0x30] sm:$0xff]
        %v290 = vld [vmem:[%s282 + $0x38] sm:$0xff]
        %v291 = vld [vmem:[%s282 + $0x40] sm:$0xff]
        %v292 = vld [vmem:[%s282 + $0x48] sm:$0xff]
        %v293 = vld [vmem:[%s282 + $0x50] sm:$0xff]
        %v294 = vld [vmem:[%s282 + $0x58] sm:$0xff]
        %v295 = vld [vmem:[%s282 + $0x60] sm:$0xff]
        %v296 = vld [vmem:[%s282 + $0x68] sm:$0xff]
        %v297 = vld [vmem:[%s282 + $0x70] sm:$0xff]
        %v298 = vld [vmem:[%s282 + $0x78] sm:$0xff]
        %v299 = vld [vmem:[%s282 + $0x80] sm:$0xff]
        %v300 = vld [vmem:[%s282 + $0x88] sm:$0xff]
        %v301 = vld [vmem:[%s282 + $0x90] sm:$0xff]
        %v302 = vld [vmem:[%s282 + $0x98] sm:$0xff]
        %v303 = vld [vmem:[%s282 + $0xa0] sm:$0xff]
        %v304 = vld [vmem:[%s282 + $0xa8] sm:$0xff]
        %v305 = vld [vmem:[%s282 + $0xb0] sm:$0xff]
        %v306 = vld [vmem:[%s282 + $0xb8] sm:$0xff]
        %v307 = vld [vmem:[%s282 + $0xc0] sm:$0xff]
        %v308 = vld [vmem:[%s282 + $0xc8] sm:$0xff]
        %v309 = vld [vmem:[%s282 + $0xd0] sm:$0xff]
        %v310 = vld [vmem:[%s282 + $0xd8] sm:$0xff]
        %v311 = vld [vmem:[%s282 + $0xe0] sm:$0xff]
        %v312 = vld [vmem:[%s282 + $0xe8] sm:$0xff]
        %v313 = vld [vmem:[%s282 + $0xf0] sm:$0xff]
        %v314 = vld [vmem:[%s282 + $0xf8] sm:$0xff]
        %v315 = vadd.f32 %v283, %v285
        %v316 = vadd.f32 %v315, %v287
        %v317 = vadd.f32 %v316, %v289
        %v318 = vadd.f32 %v317, %v291
        %v319 = vadd.f32 %v318, %v293
        %v320 = vadd.f32 %v319, %v295
        %v321 = vadd.f32 %v320, %v297
        %v322 = vadd.f32 %v321, %v299
        %v323 = vadd.f32 %v322, %v301
        %v324 = vadd.f32 %v323, %v303
        %v325 = vadd.f32 %v324, %v305
        %v326 = vadd.f32 %v325, %v307
        %v327 = vadd.f32 %v326, %v309
        %v328 = vadd.f32 %v327, %v311
        %v329 = vadd.f32 %v328, %v313
        %v330 = vadd.f32 %v284, %v286
        %v331 = vadd.f32 %v330, %v288
        %v332 = vadd.f32 %v331, %v290
        %v333 = vadd.f32 %v332, %v292
        %v334 = vadd.f32 %v333, %v294
        %v335 = vadd.f32 %v334, %v296
        %v336 = vadd.f32 %v335, %v298
        %v337 = vadd.f32 %v336, %v300
        %v338 = vadd.f32 %v337, %v302
        %v339 = vadd.f32 %v338, %v304
        %v340 = vadd.f32 %v339, %v306
        %v341 = vadd.f32 %v340, %v308
        %v342 = vadd.f32 %v341, %v310
        %v343 = vadd.f32 %v342, %v312
        %v344 = vadd.f32 %v343, %v314
        %v345 = vmul.f32 %v329, 0.0625
        %v346 = vmul.f32 %v344, 0.0625
        %v347 = vmax.f32 %v283, %v287
        %v348 = vmax.f32 %v285, %v289
        %v349 = vmax.f32 %v347, %v291
        %v350 = vmax.f32 %v348, %v293
        %v351 = vmax.f32 %v349, %v295
        %v352 = vmax.f32 %v350, %v297
        %v353 = vmax.f32 %v351, %v299
        %v354 = vmax.f32 %v352, %v301
        %v355 = vmax.f32 %v353, %v303
        %v356 = vmax.f32 %v354, %v305
        %v357 = vmax.f32 %v355, %v307
        %v358 = vmax.f32 %v356, %v309
        %v359 = vmax.f32 %v357, %v311
        %v360 = vmax.f32 %v358, %v313
        %v361 = vmax.f32 %v359, %v360
        %v362 = vmax.f32 %v284, %v288
        %v363 = vmax.f32 %v286, %v290
        %v364 = vmax.f32 %v362, %v292
        %v365 = vmax.f32 %v363, %v294
        %v366 = vmax.f32 %v364, %v296
        %v367 = vmax.f32 %v365, %v298
        %v368 = vmax.f32 %v366, %v300
        %v369 = vmax.f32 %v367, %v302
        %v370 = vmax.f32 %v368, %v304
        %v371 = vmax.f32 %v369, %v306
        %v372 = vmax.f32 %v370, %v308
        %v373 = vmax.f32 %v371, %v310
        %v374 = vmax.f32 %v372, %v312
        %v375 = vmax.f32 %v373, %v314
        %v376 = vmax.f32 %v374, %v375
        %s377 = scalar_lea.vmem [#allocation2], 64
        %378 = vst [vmem:[%s377] sm:$0xff] 0.0
        %379 = vst [vmem:[%s377 + $0x8] sm:$0xff] 0.0
        %380 = vst [vmem:[%s377 + $0x30] sm:$0xff] 0.0
        %381 = vst [vmem:[%s377 + $0x38] sm:$0xff] 0.0
        %382 = vst [vmem:[%s377 + $0x10] sm:$0xff] %v345
        %383 = vst [vmem:[%s377 + $0x20] sm:$0xff] %v346
        %384 = vst [vmem:[%s377 + $0x18] sm:$0xff] %v361
        %385 = vst [vmem:[%s377 + $0x28] sm:$0xff] %v376
        %v386 = vld [vmem:[#allocation2] sm:$0xe0]
        %v387 = vld [vmem:[#allocation2 + $0x8] sm:$0xe0]
        %v388 = vld [vmem:[#allocation2 + $0x10] sm:$0xff]
        %v389 = vld [vmem:[#allocation2 + $0x18] sm:$0xff]
        %v390 = vld [vmem:[#allocation2 + $0x20] sm:$0x1f]
        %v391 = vld [vmem:[#allocation2 + $0x28] sm:$0x1f]
        %vm398 = vcmask 1042432
        %v399 = vrot.slane %v386, 5
        %v400 = vrot.slane %v388, 5
        %v401 = vsel %vm398, %v399, %v400
        %v402 = vrot.slane %v387, 5
        %v403 = vrot.slane %v389, 5
        %v404 = vsel %vm398, %v402, %v403
        %v405 = vrot.slane %v390, 5
        %v406 = vsel %vm398, %v400, %v405
        %v407 = vrot.slane %v391, 5
        %v408 = vsel %vm398, %v403, %v407
        %413 = vst [vmem:[#allocation3] sm:$0xff] %v401
        %414 = vst [vmem:[#allocation3 + $0x8] sm:$0xff] %v404
        %415 = vst [vmem:[#allocation3 + $0x70] sm:$0xff] %v406
        %416 = vst [vmem:[#allocation3 + $0x78] sm:$0xff] %v408
        %v417 = vld [vmem:[#allocation2] sm:$0xc0]
        %v418 = vld [vmem:[#allocation2 + $0x8] sm:$0xc0]
        %v419 = vld [vmem:[#allocation2 + $0x10] sm:$0xff]
        %v420 = vld [vmem:[#allocation2 + $0x18] sm:$0xff]
        %v421 = vld [vmem:[#allocation2 + $0x20] sm:$0x3f]
        %v422 = vld [vmem:[#allocation2 + $0x28] sm:$0x3f]
        %vm429 = vcmask 1041408
        %v430 = vrot.slane %v417, 6
        %v431 = vrot.slane %v419, 6
        %v432 = vsel %vm429, %v430, %v431
        %v433 = vrot.slane %v418, 6
        %v434 = vrot.slane %v420, 6
        %v435 = vsel %vm429, %v433, %v434
        %v436 = vrot.slane %v421, 6
        %v437 = vsel %vm429, %v431, %v436
        %v438 = vrot.slane %v422, 6
        %v439 = vsel %vm429, %v434, %v438
        %444 = vst [vmem:[#allocation3 + $0x10] sm:$0xff] %v432
        %445 = vst [vmem:[#allocation3 + $0x18] sm:$0xff] %v435
        %446 = vst [vmem:[#allocation3 + $0x80] sm:$0xff] %v437
        %447 = vst [vmem:[#allocation3 + $0x88] sm:$0xff] %v439
        %v448 = vld [vmem:[#allocation2] sm:$0x80]
        %v449 = vld [vmem:[#allocation2 + $0x8] sm:$0x80]
        %v450 = vld [vmem:[#allocation2 + $0x10] sm:$0xff]
        %v451 = vld [vmem:[#allocation2 + $0x18] sm:$0xff]
        %v452 = vld [vmem:[#allocation2 + $0x20] sm:$0x7f]
        %v453 = vld [vmem:[#allocation2 + $0x28] sm:$0x7f]
        %vm460 = vcmask 1040384
        %v461 = vrot.slane %v448, 7
        %v462 = vrot.slane %v450, 7
        %v463 = vsel %vm460, %v461, %v462
        %v464 = vrot.slane %v449, 7
        %v465 = vrot.slane %v451, 7
        %v466 = vsel %vm460, %v464, %v465
        %v467 = vrot.slane %v452, 7
        %v468 = vsel %vm460, %v462, %v467
        %v469 = vrot.slane %v453, 7
        %v470 = vsel %vm460, %v465, %v469
        %475 = vst [vmem:[#allocation3 + $0x20] sm:$0xff] %v463
        %476 = vst [vmem:[#allocation3 + $0x28] sm:$0xff] %v466
        %477 = vst [vmem:[#allocation3 + $0x90] sm:$0xff] %v468
        %478 = vst [vmem:[#allocation3 + $0x98] sm:$0xff] %v470
        %v479 = vld [vmem:[#allocation2 + $0x10] sm:$0xff]
        %v480 = vld [vmem:[#allocation2 + $0x18] sm:$0xff]
        %v481 = vld [vmem:[#allocation2 + $0x20] sm:$0xff]
        %v482 = vld [vmem:[#allocation2 + $0x28] sm:$0xff]
        %483 = vst [vmem:[#allocation3 + $0x30] sm:$0xff] %v479
        %484 = vst [vmem:[#allocation3 + $0x38] sm:$0xff] %v480
        %485 = vst [vmem:[#allocation3 + $0xa0] sm:$0xff] %v481
        %486 = vst [vmem:[#allocation3 + $0xa8] sm:$0xff] %v482
        %v487 = vld [vmem:[#allocation2 + $0x10] sm:$0xfe]
        %v488 = vld [vmem:[#allocation2 + $0x18] sm:$0xfe]
        %v489 = vld [vmem:[#allocation2 + $0x20] sm:$0xff]
        %v490 = vld [vmem:[#allocation2 + $0x28] sm:$0xff]
        %v491 = vld [vmem:[#allocation2 + $0x30] sm:$0x1]
        %v492 = vld [vmem:[#allocation2 + $0x38] sm:$0x1]
        %vm499 = vcmask 1046528
        %v500 = vrot.slane %v487, 1
        %v501 = vrot.slane %v489, 1
        %v502 = vsel %vm499, %v500, %v501
        %v503 = vrot.slane %v488, 1
        %v504 = vrot.slane %v490, 1
        %v505 = vsel %vm499, %v503, %v504
        %v506 = vrot.slane %v491, 1
        %v507 = vsel %vm499, %v501, %v506
        %v508 = vrot.slane %v492, 1
        %v509 = vsel %vm499, %v504, %v508
        %514 = vst [vmem:[#allocation3 + $0x40] sm:$0xff] %v502
        %515 = vst [vmem:[#allocation3 + $0x48] sm:$0xff] %v505
        %516 = vst [vmem:[#allocation3 + $0xb0] sm:$0xff] %v507
        %517 = vst [vmem:[#allocation3 + $0xb8] sm:$0xff] %v509
        %v518 = vld [vmem:[#allocation2 + $0x10] sm:$0xfc]
        %v519 = vld [vmem:[#allocation2 + $0x18] sm:$0xfc]
        %v520 = vld [vmem:[#allocation2 + $0x20] sm:$0xff]
        %v521 = vld [vmem:[#allocation2 + $0x28] sm:$0xff]
        %v522 = vld [vmem:[#allocation2 + $0x30] sm:$0x3]
        %v523 = vld [vmem:[#allocation2 + $0x38] sm:$0x3]
        %vm530 = vcmask 1045504
        %v531 = vrot.slane %v518, 2
        %v532 = vrot.slane %v520, 2
        %v533 = vsel %vm530, %v531, %v532
        %v534 = vrot.slane %v519, 2
        %v535 = vrot.slane %v521, 2
        %v536 = vsel %vm530, %v534, %v535
        %v537 = vrot.slane %v522, 2
        %v538 = vsel %vm530, %v532, %v537
        %v539 = vrot.slane %v523, 2
        %v540 = vsel %vm530, %v535, %v539
        %545 = vst [vmem:[#allocation3 + $0x50] sm:$0xff] %v533
        %546 = vst [vmem:[#allocation3 + $0x58] sm:$0xff] %v536
        %547 = vst [vmem:[#allocation3 + $0xc0] sm:$0xff] %v538
        %548 = vst [vmem:[#allocation3 + $0xc8] sm:$0xff] %v540
        %v549 = vld [vmem:[#allocation2 + $0x10] sm:$0xf8]
        %v550 = vld [vmem:[#allocation2 + $0x18] sm:$0xf8]
        %v551 = vld [vmem:[#allocation2 + $0x20] sm:$0xff]
        %v552 = vld [vmem:[#allocation2 + $0x28] sm:$0xff]
        %v553 = vld [vmem:[#allocation2 + $0x30] sm:$0x7]
        %v554 = vld [vmem:[#allocation2 + $0x38] sm:$0x7]
        %vm561 = vcmask 1044480
        %v562 = vrot.slane %v549, 3
        %v563 = vrot.slane %v551, 3
        %v564 = vsel %vm561, %v562, %v563
        %v565 = vrot.slane %v550, 3
        %v566 = vrot.slane %v552, 3
        %v567 = vsel %vm561, %v565, %v566
        %v568 = vrot.slane %v553, 3
        %v569 = vsel %vm561, %v563, %v568
        %v570 = vrot.slane %v554, 3
        %v571 = vsel %vm561, %v566, %v570
        %576 = vst [vmem:[#allocation3 + $0x60] sm:$0xff] %v564
        %577 = vst [vmem:[#allocation3 + $0x68] sm:$0xff] %v567
        %578 = vst [vmem:[#allocation3 + $0xd0] sm:$0xff] %v569
        %579 = vst [vmem:[#allocation3 + $0xd8] sm:$0xff] %v571
        %v580 = vld [vmem:[%s377] sm:$0xe0]
        %v581 = vld [vmem:[%s377 + $0x8] sm:$0xe0]
        %v582 = vld [vmem:[%s377 + $0x10] sm:$0xff]
        %v583 = vld [vmem:[%s377 + $0x18] sm:$0xff]
        %v584 = vld [vmem:[%s377 + $0x20] sm:$0x1f]
        %v585 = vld [vmem:[%s377 + $0x28] sm:$0x1f]
        %v592 = vrot.slane %v580, 5
        %v593 = vrot.slane %v582, 5
        %v594 = vsel %vm398, %v592, %v593
        %v595 = vrot.slane %v581, 5
        %v596 = vrot.slane %v583, 5
        %v597 = vsel %vm398, %v595, %v596
        %v598 = vrot.slane %v584, 5
        %v599 = vsel %vm398, %v593, %v598
        %v600 = vrot.slane %v585, 5
        %v601 = vsel %vm398, %v596, %v600
        %606 = vst [vmem:[#allocation3 + $0xe0] sm:$0xff] %v594
        %607 = vst [vmem:[#allocation3 + $0xe8] sm:$0xff] %v597
        %608 = vst [vmem:[#allocation3 + $0x150] sm:$0xff] %v599
        %609 = vst [vmem:[#allocation3 + $0x158] sm:$0xff] %v601
        %v610 = vld [vmem:[%s377] sm:$0xc0]
        %v611 = vld [vmem:[%s377 + $0x8] sm:$0xc0]
        %v612 = vld [vmem:[%s377 + $0x10] sm:$0xff]
        %v613 = vld [vmem:[%s377 + $0x18] sm:$0xff]
        %v614 = vld [vmem:[%s377 + $0x20] sm:$0x3f]
        %v615 = vld [vmem:[%s377 + $0x28] sm:$0x3f]
        %v622 = vrot.slane %v610, 6
        %v623 = vrot.slane %v612, 6
        %v624 = vsel %vm429, %v622, %v623
        %v625 = vrot.slane %v611, 6
        %v626 = vrot.slane %v613, 6
        %v627 = vsel %vm429, %v625, %v626
        %v628 = vrot.slane %v614, 6
        %v629 = vsel %vm429, %v623, %v628
        %v630 = vrot.slane %v615, 6
        %v631 = vsel %vm429, %v626, %v630
        %636 = vst [vmem:[#allocation3 + $0xf0] sm:$0xff] %v624
        %637 = vst [vmem:[#allocation3 + $0xf8] sm:$0xff] %v627
        %638 = vst [vmem:[#allocation3 + $0x160] sm:$0xff] %v629
        %639 = vst [vmem:[#allocation3 + $0x168] sm:$0xff] %v631
        %v640 = vld [vmem:[%s377] sm:$0x80]
        %v641 = vld [vmem:[%s377 + $0x8] sm:$0x80]
        %v642 = vld [vmem:[%s377 + $0x10] sm:$0xff]
        %v643 = vld [vmem:[%s377 + $0x18] sm:$0xff]
        %v644 = vld [vmem:[%s377 + $0x20] sm:$0x7f]
        %v645 = vld [vmem:[%s377 + $0x28] sm:$0x7f]
        %v652 = vrot.slane %v640, 7
        %v653 = vrot.slane %v642, 7
        %v654 = vsel %vm460, %v652, %v653
        %v655 = vrot.slane %v641, 7
        %v656 = vrot.slane %v643, 7
        %v657 = vsel %vm460, %v655, %v656
        %v658 = vrot.slane %v644, 7
        %v659 = vsel %vm460, %v653, %v658
        %v660 = vrot.slane %v645, 7
        %v661 = vsel %vm460, %v656, %v660
        %666 = vst [vmem:[#allocation3 + $0x100] sm:$0xff] %v654
        %667 = vst [vmem:[#allocation3 + $0x108] sm:$0xff] %v657
        %668 = vst [vmem:[#allocation3 + $0x170] sm:$0xff] %v659
        %669 = vst [vmem:[#allocation3 + $0x178] sm:$0xff] %v661
        %v670 = vld [vmem:[%s377 + $0x10] sm:$0xff]
        %v671 = vld [vmem:[%s377 + $0x18] sm:$0xff]
        %v672 = vld [vmem:[%s377 + $0x20] sm:$0xff]
        %v673 = vld [vmem:[%s377 + $0x28] sm:$0xff]
        %674 = vst [vmem:[#allocation3 + $0x110] sm:$0xff] %v670
        %675 = vst [vmem:[#allocation3 + $0x118] sm:$0xff] %v671
        %676 = vst [vmem:[#allocation3 + $0x180] sm:$0xff] %v672
        %677 = vst [vmem:[#allocation3 + $0x188] sm:$0xff] %v673
        %v678 = vld [vmem:[%s377 + $0x10] sm:$0xfe]
        %v679 = vld [vmem:[%s377 + $0x18] sm:$0xfe]
        %v680 = vld [vmem:[%s377 + $0x20] sm:$0xff]
        %v681 = vld [vmem:[%s377 + $0x28] sm:$0xff]
        %v682 = vld [vmem:[%s377 + $0x30] sm:$0x1]
        %v683 = vld [vmem:[%s377 + $0x38] sm:$0x1]
        %v690 = vrot.slane %v678, 1
        %v691 = vrot.slane %v680, 1
        %v692 = vsel %vm499, %v690, %v691
        %v693 = vrot.slane %v679, 1
        %v694 = vrot.slane %v681, 1
        %v695 = vsel %vm499, %v693, %v694
        %v696 = vrot.slane %v682, 1
        %v697 = vsel %vm499, %v691, %v696
        %v698 = vrot.slane %v683, 1
        %v699 = vsel %vm499, %v694, %v698
        %704 = vst [vmem:[#allocation3 + $0x120] sm:$0xff] %v692
        %705 = vst [vmem:[#allocation3 + $0x128] sm:$0xff] %v695
        %706 = vst [vmem:[#allocation3 + $0x190] sm:$0xff] %v697
        %707 = vst [vmem:[#allocation3 + $0x198] sm:$0xff] %v699
        %v708 = vld [vmem:[%s377 + $0x10] sm:$0xfc]
        %v709 = vld [vmem:[%s377 + $0x18] sm:$0xfc]
        %v710 = vld [vmem:[%s377 + $0x20] sm:$0xff]
        %v711 = vld [vmem:[%s377 + $0x28] sm:$0xff]
        %v712 = vld [vmem:[%s377 + $0x30] sm:$0x3]
        %v713 = vld [vmem:[%s377 + $0x38] sm:$0x3]
        %v720 = vrot.slane %v708, 2
        %v721 = vrot.slane %v710, 2
        %v722 = vsel %vm530, %v720, %v721
        %v723 = vrot.slane %v709, 2
        %v724 = vrot.slane %v711, 2
        %v725 = vsel %vm530, %v723, %v724
        %v726 = vrot.slane %v712, 2
        %v727 = vsel %vm530, %v721, %v726
        %v728 = vrot.slane %v713, 2
        %v729 = vsel %vm530, %v724, %v728
        %734 = vst [vmem:[#allocation3 + $0x130] sm:$0xff] %v722
        %735 = vst [vmem:[#allocation3 + $0x138] sm:$0xff] %v725
        %736 = vst [vmem:[#allocation3 + $0x1a0] sm:$0xff] %v727
        %737 = vst [vmem:[#allocation3 + $0x1a8] sm:$0xff] %v729
        %v738 = vld [vmem:[%s377 + $0x10] sm:$0xf8]
        %v739 = vld [vmem:[%s377 + $0x18] sm:$0xf8]
        %v740 = vld [vmem:[%s377 + $0x20] sm:$0xff]
        %v741 = vld [vmem:[%s377 + $0x28] sm:$0xff]
        %v742 = vld [vmem:[%s377 + $0x30] sm:$0x7]
        %v743 = vld [vmem:[%s377 + $0x38] sm:$0x7]
        %v750 = vrot.slane %v738, 3
        %v751 = vrot.slane %v740, 3
        %v752 = vsel %vm561, %v750, %v751
        %v753 = vrot.slane %v739, 3
        %v754 = vrot.slane %v741, 3
        %v755 = vsel %vm561, %v753, %v754
        %v756 = vrot.slane %v742, 3
        %v757 = vsel %vm561, %v751, %v756
        %v758 = vrot.slane %v743, 3
        %v759 = vsel %vm561, %v754, %v758
        %764 = vst [vmem:[#allocation3 + $0x140] sm:$0xff] %v752
        %765 = vst [vmem:[#allocation3 + $0x148] sm:$0xff] %v755
        %766 = vst [vmem:[#allocation3 + $0x1b0] sm:$0xff] %v757
        %767 = vst [vmem:[#allocation3 + $0x1b8] sm:$0xff] %v759
        %v768 = vld [vmem:[#allocation3] sm:$0xff]
        %v769 = vld [vmem:[#allocation3 + $0x8] sm:$0xff]
        %v770 = vld [vmem:[#allocation3 + $0x10] sm:$0xff]
        %v771 = vld [vmem:[#allocation3 + $0x18] sm:$0xff]
        %v772 = vld [vmem:[#allocation3 + $0x20] sm:$0xff]
        %v773 = vld [vmem:[#allocation3 + $0x28] sm:$0xff]
        %v774 = vld [vmem:[#allocation3 + $0x30] sm:$0xff]
        %v775 = vld [vmem:[#allocation3 + $0x38] sm:$0xff]
        %v776 = vld [vmem:[#allocation3 + $0x40] sm:$0xff]
        %v777 = vld [vmem:[#allocation3 + $0x48] sm:$0xff]
        %v778 = vld [vmem:[#allocation3 + $0x50] sm:$0xff]
        %v779 = vld [vmem:[#allocation3 + $0x58] sm:$0xff]
        %v780 = vld [vmem:[#allocation3 + $0x60] sm:$0xff]
        %v781 = vld [vmem:[#allocation3 + $0x68] sm:$0xff]
        %v782 = vld [vmem:[#allocation3 + $0x70] sm:$0xff]
        %v783 = vld [vmem:[#allocation3 + $0x78] sm:$0xff]
        %v784 = vld [vmem:[#allocation3 + $0x80] sm:$0xff]
        %v785 = vld [vmem:[#allocation3 + $0x88] sm:$0xff]
        %v786 = vld [vmem:[#allocation3 + $0x90] sm:$0xff]
        %v787 = vld [vmem:[#allocation3 + $0x98] sm:$0xff]
        %v788 = vld [vmem:[#allocation3 + $0xa0] sm:$0xff]
        %v789 = vld [vmem:[#allocation3 + $0xa8] sm:$0xff]
        %v790 = vld [vmem:[#allocation3 + $0xb0] sm:$0xff]
        %v791 = vld [vmem:[#allocation3 + $0xb8] sm:$0xff]
        %v792 = vld [vmem:[#allocation3 + $0xc0] sm:$0xff]
        %v793 = vld [vmem:[#allocation3 + $0xc8] sm:$0xff]
        %v794 = vld [vmem:[#allocation3 + $0xd0] sm:$0xff]
        %v795 = vld [vmem:[#allocation3 + $0xd8] sm:$0xff]
        %v796 = vld [vmem:[#allocation3 + $0xe0] sm:$0xff]
        %v797 = vld [vmem:[#allocation3 + $0xe8] sm:$0xff]
        %v798 = vld [vmem:[#allocation3 + $0xf0] sm:$0xff]
        %v799 = vld [vmem:[#allocation3 + $0xf8] sm:$0xff]
        %v800 = vld [vmem:[#allocation3 + $0x100] sm:$0xff]
        %v801 = vld [vmem:[#allocation3 + $0x108] sm:$0xff]
        %v802 = vld [vmem:[#allocation3 + $0x110] sm:$0xff]
        %v803 = vld [vmem:[#allocation3 + $0x118] sm:$0xff]
        %v804 = vld [vmem:[#allocation3 + $0x120] sm:$0xff]
        %v805 = vld [vmem:[#allocation3 + $0x128] sm:$0xff]
        %v806 = vld [vmem:[#allocation3 + $0x130] sm:$0xff]
        %v807 = vld [vmem:[#allocation3 + $0x138] sm:$0xff]
        %v808 = vld [vmem:[#allocation3 + $0x140] sm:$0xff]
        %v809 = vld [vmem:[#allocation3 + $0x148] sm:$0xff]
        %v810 = vld [vmem:[#allocation3 + $0x150] sm:$0xff]
        %v811 = vld [vmem:[#allocation3 + $0x158] sm:$0xff]
        %v812 = vld [vmem:[#allocation3 + $0x160] sm:$0xff]
        %v813 = vld [vmem:[#allocation3 + $0x168] sm:$0xff]
        %v814 = vld [vmem:[#allocation3 + $0x170] sm:$0xff]
        %v815 = vld [vmem:[#allocation3 + $0x178] sm:$0xff]
        %v816 = vld [vmem:[#allocation3 + $0x180] sm:$0xff]
        %v817 = vld [vmem:[#allocation3 + $0x188] sm:$0xff]
        %v818 = vld [vmem:[#allocation3 + $0x190] sm:$0xff]
        %v819 = vld [vmem:[#allocation3 + $0x198] sm:$0xff]
        %v820 = vld [vmem:[#allocation3 + $0x1a0] sm:$0xff]
        %v821 = vld [vmem:[#allocation3 + $0x1a8] sm:$0xff]
        %v822 = vld [vmem:[#allocation3 + $0x1b0] sm:$0xff]
        %v823 = vld [vmem:[#allocation3 + $0x1b8] sm:$0xff]
        %v824 = vld [vmem:[#allocation7] sm:$0xff]
        %v825 = vld [vmem:[#allocation7 + $0x8] sm:$0xff]
        %v826 = vld [vmem:[#allocation7 + $0x10] sm:$0xff]
        %v827 = vld [vmem:[#allocation7 + $0x18] sm:$0xff]
        %v828 = vld [vmem:[#allocation7 + $0x20] sm:$0xff]
        %v829 = vld [vmem:[#allocation7 + $0x28] sm:$0xff]
        %v830 = vld [vmem:[#allocation7 + $0x30] sm:$0xff]
        %v831 = vld [vmem:[#allocation7 + $0x38] sm:$0xff]
        %v832 = vld [vmem:[#allocation7 + $0x40] sm:$0xff]
        %v833 = vld [vmem:[#allocation7 + $0x48] sm:$0xff]
        %v834 = vld [vmem:[#allocation7 + $0x50] sm:$0xff]
        %v835 = vld [vmem:[#allocation7 + $0x58] sm:$0xff]
        %v836 = vld [vmem:[#allocation7 + $0x60] sm:$0xff]
        %v837 = vld [vmem:[#allocation7 + $0x68] sm:$0xff]
        %v838 = vld [vmem:[#allocation7 + $0x70] sm:$0xff]
        %v839 = vld [vmem:[#allocation7 + $0x78] sm:$0xff]
        %v840 = vld [vmem:[#allocation7 + $0x80] sm:$0xff]
        %v841 = vld [vmem:[#allocation7 + $0x88] sm:$0xff]
        %v842 = vld [vmem:[#allocation7 + $0x90] sm:$0xff]
        %v843 = vld [vmem:[#allocation7 + $0x98] sm:$0xff]
        %v844 = vld [vmem:[#allocation7 + $0xa0] sm:$0xff]
        %v845 = vld [vmem:[#allocation7 + $0xa8] sm:$0xff]
        %v846 = vld [vmem:[#allocation7 + $0xb0] sm:$0xff]
        %v847 = vld [vmem:[#allocation7 + $0xb8] sm:$0xff]
        %v848 = vld [vmem:[#allocation7 + $0xc0] sm:$0xff]
        %v849 = vld [vmem:[#allocation7 + $0xc8] sm:$0xff]
        %v850 = vld [vmem:[#allocation7 + $0xd0] sm:$0xff]
        %v851 = vld [vmem:[#allocation7 + $0xd8] sm:$0xff]
        %v852 = vld [vmem:[#allocation7 + $0xe0] sm:$0xff]
        %v853 = vld [vmem:[#allocation7 + $0xe8] sm:$0xff]
        %v854 = vld [vmem:[#allocation7 + $0xf0] sm:$0xff]
        %v855 = vld [vmem:[#allocation7 + $0xf8] sm:$0xff]
        %v856 = vld [vmem:[#allocation7 + $0x100] sm:$0xff]
        %v857 = vld [vmem:[#allocation7 + $0x108] sm:$0xff]
        %v858 = vld [vmem:[#allocation7 + $0x110] sm:$0xff]
        %v859 = vld [vmem:[#allocation7 + $0x118] sm:$0xff]
        %v860 = vld [vmem:[#allocation7 + $0x120] sm:$0xff]
        %v861 = vld [vmem:[#allocation7 + $0x128] sm:$0xff]
        %v862 = vld [vmem:[#allocation7 + $0x130] sm:$0xff]
        %v863 = vld [vmem:[#allocation7 + $0x138] sm:$0xff]
        %v864 = vld [vmem:[#allocation7 + $0x140] sm:$0xff]
        %v865 = vld [vmem:[#allocation7 + $0x148] sm:$0xff]
        %v866 = vld [vmem:[#allocation7 + $0x150] sm:$0xff]
        %v867 = vld [vmem:[#allocation7 + $0x158] sm:$0xff]
        %v868 = vld [vmem:[#allocation7 + $0x160] sm:$0xff]
        %v869 = vld [vmem:[#allocation7 + $0x168] sm:$0xff]
        %v870 = vld [vmem:[#allocation7 + $0x170] sm:$0xff]
        %v871 = vld [vmem:[#allocation7 + $0x178] sm:$0xff]
        %v872 = vld [vmem:[#allocation7 + $0x180] sm:$0xff]
        %v873 = vld [vmem:[#allocation7 + $0x188] sm:$0xff]
        %v874 = vld [vmem:[#allocation7 + $0x190] sm:$0xff]
        %v875 = vld [vmem:[#allocation7 + $0x198] sm:$0xff]
        %v876 = vld [vmem:[#allocation7 + $0x1a0] sm:$0xff]
        %v877 = vld [vmem:[#allocation7 + $0x1a8] sm:$0xff]
        %v878 = vld [vmem:[#allocation7 + $0x1b0] sm:$0xff]
        %v879 = vld [vmem:[#allocation7 + $0x1b8] sm:$0xff]
        %v880 = vld [vmem:[#allocation7 + $0x1c0] sm:$0xff]
        %v881 = vld [vmem:[#allocation7 + $0x1c8] sm:$0xff]
        %v882 = vld [vmem:[#allocation7 + $0x1d0] sm:$0xff]
        %v883 = vld [vmem:[#allocation7 + $0x1d8] sm:$0xff]
        %v884 = vld [vmem:[#allocation7 + $0x1e0] sm:$0xff]
        %v885 = vld [vmem:[#allocation7 + $0x1e8] sm:$0xff]
        %v886 = vld [vmem:[#allocation7 + $0x1f0] sm:$0xff]
        %v887 = vld [vmem:[#allocation7 + $0x1f8] sm:$0xff]
        %v888 = vld [vmem:[#allocation7 + $0x200] sm:$0xff]
        %v889 = vld [vmem:[#allocation7 + $0x208] sm:$0xff]
        %v890 = vld [vmem:[#allocation7 + $0x210] sm:$0xff]
        %v891 = vld [vmem:[#allocation7 + $0x218] sm:$0xff]
        %v892 = vld [vmem:[#allocation7 + $0x220] sm:$0xff]
        %v893 = vld [vmem:[#allocation7 + $0x228] sm:$0xff]
        %v894 = vld [vmem:[#allocation7 + $0x230] sm:$0xff]
        %v895 = vld [vmem:[#allocation7 + $0x238] sm:$0xff]
        %v896 = vld [vmem:[#allocation7 + $0x240] sm:$0xff]
        %v897 = vld [vmem:[#allocation7 + $0x248] sm:$0xff]
        %v898 = vld [vmem:[#allocation7 + $0x250] sm:$0xff]
        %v899 = vld [vmem:[#allocation7 + $0x258] sm:$0xff]
        %v900 = vld [vmem:[#allocation7 + $0x260] sm:$0xff]
        %v901 = vld [vmem:[#allocation7 + $0x268] sm:$0xff]
        %v902 = vld [vmem:[#allocation7 + $0x270] sm:$0xff]
        %v903 = vld [vmem:[#allocation7 + $0x278] sm:$0xff]
        %v904 = vld [vmem:[#allocation7 + $0x280] sm:$0xff]
        %v905 = vld [vmem:[#allocation7 + $0x288] sm:$0xff]
        %v906 = vld [vmem:[#allocation7 + $0x290] sm:$0xff]
        %v907 = vld [vmem:[#allocation7 + $0x298] sm:$0xff]
        %v908 = vld [vmem:[#allocation7 + $0x2a0] sm:$0xff]
        %v909 = vld [vmem:[#allocation7 + $0x2a8] sm:$0xff]
        %v910 = vld [vmem:[#allocation7 + $0x2b0] sm:$0xff]
        %v911 = vld [vmem:[#allocation7 + $0x2b8] sm:$0xff]
        %v912 = vld [vmem:[#allocation7 + $0x2c0] sm:$0xff]
        %v913 = vld [vmem:[#allocation7 + $0x2c8] sm:$0xff]
        %v914 = vld [vmem:[#allocation7 + $0x2d0] sm:$0xff]
        %v915 = vld [vmem:[#allocation7 + $0x2d8] sm:$0xff]
        %v916 = vld [vmem:[#allocation7 + $0x2e0] sm:$0xff]
        %v917 = vld [vmem:[#allocation7 + $0x2e8] sm:$0xff]
        %v918 = vld [vmem:[#allocation7 + $0x2f0] sm:$0xff]
        %v919 = vld [vmem:[#allocation7 + $0x2f8] sm:$0xff]
        %v920 = vld [vmem:[#allocation7 + $0x300] sm:$0xff]
        %v921 = vld [vmem:[#allocation7 + $0x308] sm:$0xff]
        %v922 = vld [vmem:[#allocation7 + $0x310] sm:$0xff]
        %v923 = vld [vmem:[#allocation7 + $0x318] sm:$0xff]
        %v924 = vld [vmem:[#allocation7 + $0x320] sm:$0xff]
        %v925 = vld [vmem:[#allocation7 + $0x328] sm:$0xff]
        %v926 = vld [vmem:[#allocation7 + $0x330] sm:$0xff]
        %v927 = vld [vmem:[#allocation7 + $0x338] sm:$0xff]
        %v928 = vld [vmem:[#allocation7 + $0x340] sm:$0xff]
        %v929 = vld [vmem:[#allocation7 + $0x348] sm:$0xff]
        %v930 = vld [vmem:[#allocation7 + $0x350] sm:$0xff]
        %v931 = vld [vmem:[#allocation7 + $0x358] sm:$0xff]
        %v932 = vld [vmem:[#allocation7 + $0x360] sm:$0xff]
        %v933 = vld [vmem:[#allocation7 + $0x368] sm:$0xff]
        %v934 = vld [vmem:[#allocation7 + $0x370] sm:$0xff]
        %v935 = vld [vmem:[#allocation7 + $0x378] sm:$0xff]
        %v936 = vld [vmem:[#allocation7 + $0x380] sm:$0xff]
        %v937 = vld [vmem:[#allocation7 + $0x388] sm:$0xff]
        %v938 = vld [vmem:[#allocation7 + $0x390] sm:$0xff]
        %v939 = vld [vmem:[#allocation7 + $0x398] sm:$0xff]
        %v940 = vld [vmem:[#allocation7 + $0x3a0] sm:$0xff]
        %v941 = vld [vmem:[#allocation7 + $0x3a8] sm:$0xff]
        %v942 = vld [vmem:[#allocation7 + $0x3b0] sm:$0xff]
        %v943 = vld [vmem:[#allocation7 + $0x3b8] sm:$0xff]
        %v944 = vld [vmem:[#allocation7 + $0x3c0] sm:$0xff]
        %v945 = vld [vmem:[#allocation7 + $0x3c8] sm:$0xff]
        %v946 = vld [vmem:[#allocation7 + $0x3d0] sm:$0xff]
        %v947 = vld [vmem:[#allocation7 + $0x3d8] sm:$0xff]
        %v948 = vld [vmem:[#allocation7 + $0x3e0] sm:$0xff]
        %v949 = vld [vmem:[#allocation7 + $0x3e8] sm:$0xff]
        %v950 = vld [vmem:[#allocation7 + $0x3f0] sm:$0xff]
        %v951 = vld [vmem:[#allocation7 + $0x3f8] sm:$0xff]
        %v952 = vld [vmem:[#allocation7 + $0x400] sm:$0xff]
        %v953 = vld [vmem:[#allocation7 + $0x408] sm:$0xff]
        %v954 = vld [vmem:[#allocation7 + $0x410] sm:$0xff]
        %v955 = vld [vmem:[#allocation7 + $0x418] sm:$0xff]
        %v956 = vld [vmem:[#allocation7 + $0x420] sm:$0xff]
        %v957 = vld [vmem:[#allocation7 + $0x428] sm:$0xff]
        %v958 = vld [vmem:[#allocation7 + $0x430] sm:$0xff]
        %v959 = vld [vmem:[#allocation7 + $0x438] sm:$0xff]
        %v960 = vld [vmem:[#allocation7 + $0x440] sm:$0xff]
        %v961 = vld [vmem:[#allocation7 + $0x448] sm:$0xff]
        %v962 = vld [vmem:[#allocation7 + $0x450] sm:$0xff]
        %v963 = vld [vmem:[#allocation7 + $0x458] sm:$0xff]
        %v964 = vld [vmem:[#allocation7 + $0x460] sm:$0xff]
        %v965 = vld [vmem:[#allocation7 + $0x468] sm:$0xff]
        %v966 = vld [vmem:[#allocation7 + $0x470] sm:$0xff]
        %v967 = vld [vmem:[#allocation7 + $0x478] sm:$0xff]
        %v968 = vld [vmem:[#allocation7 + $0x480] sm:$0xff]
        %v969 = vld [vmem:[#allocation7 + $0x488] sm:$0xff]
        %v970 = vld [vmem:[#allocation7 + $0x490] sm:$0xff]
        %v971 = vld [vmem:[#allocation7 + $0x498] sm:$0xff]
        %v972 = vld [vmem:[#allocation7 + $0x4a0] sm:$0xff]
        %v973 = vld [vmem:[#allocation7 + $0x4a8] sm:$0xff]
        %v974 = vld [vmem:[#allocation7 + $0x4b0] sm:$0xff]
        %v975 = vld [vmem:[#allocation7 + $0x4b8] sm:$0xff]
        %v976 = vld [vmem:[#allocation7 + $0x4c0] sm:$0xff]
        %v977 = vld [vmem:[#allocation7 + $0x4c8] sm:$0xff]
        %v978 = vld [vmem:[#allocation7 + $0x4d0] sm:$0xff]
        %v979 = vld [vmem:[#allocation7 + $0x4d8] sm:$0xff]
        %v980 = vld [vmem:[#allocation7 + $0x4e0] sm:$0xff]
        %v981 = vld [vmem:[#allocation7 + $0x4e8] sm:$0xff]
        %v982 = vld [vmem:[#allocation7 + $0x4f0] sm:$0xff]
        %v983 = vld [vmem:[#allocation7 + $0x4f8] sm:$0xff]
        %v984 = vld [vmem:[#allocation7 + $0x500] sm:$0xff]
        %v985 = vld [vmem:[#allocation7 + $0x508] sm:$0xff]
        %v986 = vld [vmem:[#allocation7 + $0x510] sm:$0xff]
        %v987 = vld [vmem:[#allocation7 + $0x518] sm:$0xff]
        %v988 = vld [vmem:[#allocation7 + $0x520] sm:$0xff]
        %v989 = vld [vmem:[#allocation7 + $0x528] sm:$0xff]
        %v990 = vld [vmem:[#allocation7 + $0x530] sm:$0xff]
        %v991 = vld [vmem:[#allocation7 + $0x538] sm:$0xff]
        %v992 = vld [vmem:[#allocation7 + $0x540] sm:$0xff]
        %v993 = vld [vmem:[#allocation7 + $0x548] sm:$0xff]
        %v994 = vld [vmem:[#allocation7 + $0x550] sm:$0xff]
        %v995 = vld [vmem:[#allocation7 + $0x558] sm:$0xff]
        %v996 = vld [vmem:[#allocation7 + $0x560] sm:$0xff]
        %v997 = vld [vmem:[#allocation7 + $0x568] sm:$0xff]
        %v998 = vld [vmem:[#allocation7 + $0x570] sm:$0xff]
        %v999 = vld [vmem:[#allocation7 + $0x578] sm:$0xff]
        %v1000 = vld [vmem:[#allocation7 + $0x580] sm:$0xff]
        %v1001 = vld [vmem:[#allocation7 + $0x588] sm:$0xff]
        %v1002 = vld [vmem:[#allocation7 + $0x590] sm:$0xff]
        %v1003 = vld [vmem:[#allocation7 + $0x598] sm:$0xff]
        %v1004 = vld [vmem:[#allocation7 + $0x5a0] sm:$0xff]
        %v1005 = vld [vmem:[#allocation7 + $0x5a8] sm:$0xff]
        %v1006 = vld [vmem:[#allocation7 + $0x5b0] sm:$0xff]
        %v1007 = vld [vmem:[#allocation7 + $0x5b8] sm:$0xff]
        %v1008 = vld [vmem:[#allocation7 + $0x5c0] sm:$0xff]
        %v1009 = vld [vmem:[#allocation7 + $0x5c8] sm:$0xff]
        %v1010 = vld [vmem:[#allocation7 + $0x5d0] sm:$0xff]
        %v1011 = vld [vmem:[#allocation7 + $0x5d8] sm:$0xff]
        %v1012 = vld [vmem:[#allocation7 + $0x5e0] sm:$0xff]
        %v1013 = vld [vmem:[#allocation7 + $0x5e8] sm:$0xff]
        %v1014 = vld [vmem:[#allocation7 + $0x5f0] sm:$0xff]
        %v1015 = vld [vmem:[#allocation7 + $0x5f8] sm:$0xff]
        %v1016 = vld [vmem:[#allocation7 + $0x600] sm:$0xff]
        %v1017 = vld [vmem:[#allocation7 + $0x608] sm:$0xff]
        %v1018 = vld [vmem:[#allocation7 + $0x610] sm:$0xff]
        %v1019 = vld [vmem:[#allocation7 + $0x618] sm:$0xff]
        %v1020 = vld [vmem:[#allocation7 + $0x620] sm:$0xff]
        %v1021 = vld [vmem:[#allocation7 + $0x628] sm:$0xff]
        %v1022 = vld [vmem:[#allocation7 + $0x630] sm:$0xff]
        %v1023 = vld [vmem:[#allocation7 + $0x638] sm:$0xff]
        %v1024 = vld [vmem:[#allocation7 + $0x640] sm:$0xff]
        %v1025 = vld [vmem:[#allocation7 + $0x648] sm:$0xff]
        %v1026 = vld [vmem:[#allocation7 + $0x650] sm:$0xff]
        %v1027 = vld [vmem:[#allocation7 + $0x658] sm:$0xff]
        %v1028 = vld [vmem:[#allocation7 + $0x660] sm:$0xff]
        %v1029 = vld [vmem:[#allocation7 + $0x668] sm:$0xff]
        %v1030 = vld [vmem:[#allocation7 + $0x670] sm:$0xff]
        %v1031 = vld [vmem:[#allocation7 + $0x678] sm:$0xff]
        %v1032 = vld [vmem:[#allocation7 + $0x680] sm:$0xff]
        %v1033 = vld [vmem:[#allocation7 + $0x688] sm:$0xff]
        %v1034 = vld [vmem:[#allocation7 + $0x690] sm:$0xff]
        %v1035 = vld [vmem:[#allocation7 + $0x698] sm:$0xff]
        %v1036 = vld [vmem:[#allocation7 + $0x6a0] sm:$0xff]
        %v1037 = vld [vmem:[#allocation7 + $0x6a8] sm:$0xff]
        %v1038 = vld [vmem:[#allocation7 + $0x6b0] sm:$0xff]
        %v1039 = vld [vmem:[#allocation7 + $0x6b8] sm:$0xff]
        %v1040 = vld [vmem:[#allocation7 + $0x6c0] sm:$0xff]
        %v1041 = vld [vmem:[#allocation7 + $0x6c8] sm:$0xff]
        %v1042 = vld [vmem:[#allocation7 + $0x6d0] sm:$0xff]
        %v1043 = vld [vmem:[#allocation7 + $0x6d8] sm:$0xff]
        %v1044 = vld [vmem:[#allocation7 + $0x6e0] sm:$0xff]
        %v1045 = vld [vmem:[#allocation7 + $0x6e8] sm:$0xff]
        %v1046 = vld [vmem:[#allocation7 + $0x6f0] sm:$0xff]
        %v1047 = vld [vmem:[#allocation7 + $0x6f8] sm:$0xff]
        %1048 = vmatprep.subr.mxu0 0.0
        %1049 = vmatpush1.msra.mxu0 %v839
        %1050 = vmatprep.subr.mxu0 0.0
        %1051 = vmatpush1.msra.mxu0 %v838
        %1052 = vmatprep.subr.mxu0 0.0
        %1053 = vmatpush1.msra.mxu0 %v837
        %1054 = vmatprep.subr.mxu0 0.0
        %1055 = vmatpush1.msra.mxu0 %v836
        %1056 = vmatprep.subr.mxu0 0.0
        %1057 = vmatpush1.msra.mxu0 %v835
        %1058 = vmatprep.subr.mxu0 0.0
        %1059 = vmatpush1.msra.mxu0 %v834
        %1060 = vmatprep.subr.mxu0 0.0
        %1061 = vmatpush1.msra.mxu0 %v833
        %1062 = vmatprep.subr.mxu0 0.0
        %1063 = vmatpush1.msra.mxu0 %v832
        %1064 = vmatprep.subr.mxu0 0.0
        %1065 = vmatpush1.msra.mxu0 %v831
        %1066 = vmatprep.subr.mxu0 0.0
        %1067 = vmatpush1.msra.mxu0 %v830
        %1068 = vmatprep.subr.mxu0 0.0
        %1069 = vmatpush1.msra.mxu0 %v829
        %1070 = vmatprep.subr.mxu0 0.0
        %1071 = vmatpush1.msra.mxu0 %v828
        %1072 = vmatprep.subr.mxu0 0.0
        %1073 = vmatpush1.msra.mxu0 %v827
        %1074 = vmatprep.subr.mxu0 0.0
        %1075 = vmatpush1.msra.mxu0 %v826
        %1076 = vmatprep.subr.mxu0 0.0
        %1077 = vmatpush1.msra.mxu0 %v825
        %1078 = vmatprep.subr.mxu0 0.0
        %1079 = vmatpush1.msra.mxu0 %v824
        %1080 = vmatprep.subr.mxu0 0.0
        %1081 = vmatpush2.msra.mxu0 %v855
        %1082 = vmatprep.subr.mxu0 0.0
        %1083 = vmatpush2.msra.mxu0 %v854
        %1084 = vmatprep.subr.mxu0 0.0
        %1085 = vmatpush2.msra.mxu0 %v853
        %1086 = vmatprep.subr.mxu0 0.0
        %1087 = vmatpush2.msra.mxu0 %v852
        %1088 = vmatprep.subr.mxu0 0.0
        %1089 = vmatpush2.msra.mxu0 %v851
        %1090 = vmatprep.subr.mxu0 0.0
        %1091 = vmatpush2.msra.mxu0 %v850
        %1092 = vmatprep.subr.mxu0 0.0
        %1093 = vmatpush2.msra.mxu0 %v849
        %1094 = vmatprep.subr.mxu0 0.0
        %1095 = vmatpush2.msra.mxu0 %v848
        %1096 = vmatprep.subr.mxu0 0.0
        %1097 = vmatpush2.msra.mxu0 %v847
        %1098 = vmatprep.subr.mxu0 0.0
        %1099 = vmatpush2.msra.mxu0 %v846
        %1100 = vmatprep.subr.mxu0 0.0
        %1101 = vmatpush2.msra.mxu0 %v845
        %1102 = vmatprep.subr.mxu0 0.0
        %1103 = vmatpush2.msra.mxu0 %v844
        %1104 = vmatprep.subr.mxu0 0.0
        %1105 = vmatpush2.msra.mxu0 %v843
        %1106 = vmatprep.subr.mxu0 0.0
        %1107 = vmatpush2.msra.mxu0 %v842
        %1108 = vmatprep.subr.mxu0 0.0
        %1109 = vmatpush2.msra.mxu0 %v841
        %1110 = vmatprep.subr.mxu0 0.0
        %1111 = vmatpush2.msra.mxu0 %v840
        %1112 = vmatprep.mubr.f32.mxu0 %v769
        %1113 = vmatmul.mubr.f32.gmra.mxu0 %v768
        %v1114 = vpop.f32.mrf.mxu0
        %v1115 = vadd.f32 0.0, %v1114
        %v1116 = vpop.f32.mrf.mxu0
        %1117 = vmatprep.mubr.f32.mxu0 %v783
        %1118 = vmatmul.mubr.f32.gmra.mxu0 %v782
        %v1119 = vpop.f32.mrf.mxu0
        %v1120 = vadd.f32 0.0, %v1119
        %v1121 = vpop.f32.mrf.mxu0
        %1122 = vmatprep.mubr.f32.mxu0 %v797
        %1123 = vmatmul.mubr.f32.gmra.mxu0 %v796
        %v1124 = vpop.f32.mrf.mxu0
        %v1125 = vadd.f32 0.0, %v1124
        %v1126 = vpop.f32.mrf.mxu0
        %1127 = vmatprep.mubr.f32.mxu0 %v811
        %1128 = vmatmul.mubr.f32.gmra.mxu0 %v810
        %v1129 = vpop.f32.mrf.mxu0
        %v1130 = vadd.f32 0.0, %v1129
        %v1131 = vpop.f32.mrf.mxu0
        %1132 = vdwg.mxu0
        %1133 = vmatprep.subr.mxu0 0.0
        %1134 = vmatpush1.msra.mxu0 %v871
        %1135 = vmatprep.subr.mxu0 0.0
        %1136 = vmatpush1.msra.mxu0 %v870
        %1137 = vmatprep.subr.mxu0 0.0
        %1138 = vmatpush1.msra.mxu0 %v869
        %1139 = vmatprep.subr.mxu0 0.0
        %1140 = vmatpush1.msra.mxu0 %v868
        %1141 = vmatprep.subr.mxu0 0.0
        %1142 = vmatpush1.msra.mxu0 %v867
        %1143 = vmatprep.subr.mxu0 0.0
        %1144 = vmatpush1.msra.mxu0 %v866
        %1145 = vmatprep.subr.mxu0 0.0
        %1146 = vmatpush1.msra.mxu0 %v865
        %1147 = vmatprep.subr.mxu0 0.0
        %1148 = vmatpush1.msra.mxu0 %v864
        %1149 = vmatprep.subr.mxu0 0.0
        %1150 = vmatpush1.msra.mxu0 %v863
        %1151 = vmatprep.subr.mxu0 0.0
        %1152 = vmatpush1.msra.mxu0 %v862
        %1153 = vmatprep.subr.mxu0 0.0
        %1154 = vmatpush1.msra.mxu0 %v861
        %1155 = vmatprep.subr.mxu0 0.0
        %1156 = vmatpush1.msra.mxu0 %v860
        %1157 = vmatprep.subr.mxu0 0.0
        %1158 = vmatpush1.msra.mxu0 %v859
        %1159 = vmatprep.subr.mxu0 0.0
        %1160 = vmatpush1.msra.mxu0 %v858
        %1161 = vmatprep.subr.mxu0 0.0
        %1162 = vmatpush1.msra.mxu0 %v857
        %1163 = vmatprep.subr.mxu0 0.0
        %1164 = vmatpush1.msra.mxu0 %v856
        %1165 = vmatprep.subr.mxu0 0.0
        %1166 = vmatpush2.msra.mxu0 %v887
        %1167 = vmatprep.subr.mxu0 0.0
        %1168 = vmatpush2.msra.mxu0 %v886
        %1169 = vmatprep.subr.mxu0 0.0
        %1170 = vmatpush2.msra.mxu0 %v885
        %1171 = vmatprep.subr.mxu0 0.0
        %1172 = vmatpush2.msra.mxu0 %v884
        %1173 = vmatprep.subr.mxu0 0.0
        %1174 = vmatpush2.msra.mxu0 %v883
        %1175 = vmatprep.subr.mxu0 0.0
        %1176 = vmatpush2.msra.mxu0 %v882
        %1177 = vmatprep.subr.mxu0 0.0
        %1178 = vmatpush2.msra.mxu0 %v881
        %1179 = vmatprep.subr.mxu0 0.0
        %1180 = vmatpush2.msra.mxu0 %v880
        %1181 = vmatprep.subr.mxu0 0.0
        %1182 = vmatpush2.msra.mxu0 %v879
        %1183 = vmatprep.subr.mxu0 0.0
        %1184 = vmatpush2.msra.mxu0 %v878
        %1185 = vmatprep.subr.mxu0 0.0
        %1186 = vmatpush2.msra.mxu0 %v877
        %1187 = vmatprep.subr.mxu0 0.0
        %1188 = vmatpush2.msra.mxu0 %v876
        %1189 = vmatprep.subr.mxu0 0.0
        %1190 = vmatpush2.msra.mxu0 %v875
        %1191 = vmatprep.subr.mxu0 0.0
        %1192 = vmatpush2.msra.mxu0 %v874
        %1193 = vmatprep.subr.mxu0 0.0
        %1194 = vmatpush2.msra.mxu0 %v873
        %1195 = vmatprep.subr.mxu0 0.0
        %1196 = vmatpush2.msra.mxu0 %v872
        %1197 = vmatprep.mubr.f32.mxu0 %v771
        %1198 = vmatmul.mubr.f32.gmra.mxu0 %v770
        %v1199 = vpop.f32.mrf.mxu0
        %v1200 = vadd.f32 %v1115, %v1199
        %v1201 = vpop.f32.mrf.mxu0
        %1202 = vmatprep.mubr.f32.mxu0 %v785
        %1203 = vmatmul.mubr.f32.gmra.mxu0 %v784
        %v1204 = vpop.f32.mrf.mxu0
        %v1205 = vadd.f32 %v1120, %v1204
        %v1206 = vpop.f32.mrf.mxu0
        %1207 = vmatprep.mubr.f32.mxu0 %v799
        %1208 = vmatmul.mubr.f32.gmra.mxu0 %v798
        %v1209 = vpop.f32.mrf.mxu0
        %v1210 = vadd.f32 %v1125, %v1209
        %v1211 = vpop.f32.mrf.mxu0
        %1212 = vmatprep.mubr.f32.mxu0 %v813
        %1213 = vmatmul.mubr.f32.gmra.mxu0 %v812
        %v1214 = vpop.f32.mrf.mxu0
        %v1215 = vadd.f32 %v1130, %v1214
        %v1216 = vpop.f32.mrf.mxu0
        %1217 = vdwg.mxu0
        %1218 = vmatprep.subr.mxu0 0.0
        %1219 = vmatpush1.msra.mxu0 %v903
        %1220 = vmatprep.subr.mxu0 0.0
        %1221 = vmatpush1.msra.mxu0 %v902
        %1222 = vmatprep.subr.mxu0 0.0
        %1223 = vmatpush1.msra.mxu0 %v901
        %1224 = vmatprep.subr.mxu0 0.0
        %1225 = vmatpush1.msra.mxu0 %v900
        %1226 = vmatprep.subr.mxu0 0.0
        %1227 = vmatpush1.msra.mxu0 %v899
        %1228 = vmatprep.subr.mxu0 0.0
        %1229 = vmatpush1.msra.mxu0 %v898
        %1230 = vmatprep.subr.mxu0 0.0
        %1231 = vmatpush1.msra.mxu0 %v897
        %1232 = vmatprep.subr.mxu0 0.0
        %1233 = vmatpush1.msra.mxu0 %v896
        %1234 = vmatprep.subr.mxu0 0.0
        %1235 = vmatpush1.msra.mxu0 %v895
        %1236 = vmatprep.subr.mxu0 0.0
        %1237 = vmatpush1.msra.mxu0 %v894
        %1238 = vmatprep.subr.mxu0 0.0
        %1239 = vmatpush1.msra.mxu0 %v893
        %1240 = vmatprep.subr.mxu0 0.0
        %1241 = vmatpush1.msra.mxu0 %v892
        %1242 = vmatprep.subr.mxu0 0.0
        %1243 = vmatpush1.msra.mxu0 %v891
        %1244 = vmatprep.subr.mxu0 0.0
        %1245 = vmatpush1.msra.mxu0 %v890
        %1246 = vmatprep.subr.mxu0 0.0
        %1247 = vmatpush1.msra.mxu0 %v889
        %1248 = vmatprep.subr.mxu0 0.0
        %1249 = vmatpush1.msra.mxu0 %v888
        %1250 = vmatprep.subr.mxu0 0.0
        %1251 = vmatpush2.msra.mxu0 %v919
        %1252 = vmatprep.subr.mxu0 0.0
        %1253 = vmatpush2.msra.mxu0 %v918
        %1254 = vmatprep.subr.mxu0 0.0
        %1255 = vmatpush2.msra.mxu0 %v917
        %1256 = vmatprep.subr.mxu0 0.0
        %1257 = vmatpush2.msra.mxu0 %v916
        %1258 = vmatprep.subr.mxu0 0.0
        %1259 = vmatpush2.msra.mxu0 %v915
        %1260 = vmatprep.subr.mxu0 0.0
        %1261 = vmatpush2.msra.mxu0 %v914
        %1262 = vmatprep.subr.mxu0 0.0
        %1263 = vmatpush2.msra.mxu0 %v913
        %1264 = vmatprep.subr.mxu0 0.0
        %1265 = vmatpush2.msra.mxu0 %v912
        %1266 = vmatprep.subr.mxu0 0.0
        %1267 = vmatpush2.msra.mxu0 %v911
        %1268 = vmatprep.subr.mxu0 0.0
        %1269 = vmatpush2.msra.mxu0 %v910
        %1270 = vmatprep.subr.mxu0 0.0
        %1271 = vmatpush2.msra.mxu0 %v909
        %1272 = vmatprep.subr.mxu0 0.0
        %1273 = vmatpush2.msra.mxu0 %v908
        %1274 = vmatprep.subr.mxu0 0.0
        %1275 = vmatpush2.msra.mxu0 %v907
        %1276 = vmatprep.subr.mxu0 0.0
        %1277 = vmatpush2.msra.mxu0 %v906
        %1278 = vmatprep.subr.mxu0 0.0
        %1279 = vmatpush2.msra.mxu0 %v905
        %1280 = vmatprep.subr.mxu0 0.0
        %1281 = vmatpush2.msra.mxu0 %v904
        %1282 = vmatprep.mubr.f32.mxu0 %v773
        %1283 = vmatmul.mubr.f32.gmra.mxu0 %v772
        %v1284 = vpop.f32.mrf.mxu0
        %v1285 = vadd.f32 %v1200, %v1284
        %v1286 = vpop.f32.mrf.mxu0
        %1287 = vmatprep.mubr.f32.mxu0 %v787
        %1288 = vmatmul.mubr.f32.gmra.mxu0 %v786
        %v1289 = vpop.f32.mrf.mxu0
        %v1290 = vadd.f32 %v1205, %v1289
        %v1291 = vpop.f32.mrf.mxu0
        %1292 = vmatprep.mubr.f32.mxu0 %v801
        %1293 = vmatmul.mubr.f32.gmra.mxu0 %v800
        %v1294 = vpop.f32.mrf.mxu0
        %v1295 = vadd.f32 %v1210, %v1294
        %v1296 = vpop.f32.mrf.mxu0
        %1297 = vmatprep.mubr.f32.mxu0 %v815
        %1298 = vmatmul.mubr.f32.gmra.mxu0 %v814
        %v1299 = vpop.f32.mrf.mxu0
        %v1300 = vadd.f32 %v1215, %v1299
        %v1301 = vpop.f32.mrf.mxu0
        %1302 = vdwg.mxu0
        %1303 = vmatprep.subr.mxu0 0.0
        %1304 = vmatpush1.msra.mxu0 %v935
        %1305 = vmatprep.subr.mxu0 0.0
        %1306 = vmatpush1.msra.mxu0 %v934
        %1307 = vmatprep.subr.mxu0 0.0
        %1308 = vmatpush1.msra.mxu0 %v933
        %1309 = vmatprep.subr.mxu0 0.0
        %1310 = vmatpush1.msra.mxu0 %v932
        %1311 = vmatprep.subr.mxu0 0.0
        %1312 = vmatpush1.msra.mxu0 %v931
        %1313 = vmatprep.subr.mxu0 0.0
        %1314 = vmatpush1.msra.mxu0 %v930
        %1315 = vmatprep.subr.mxu0 0.0
        %1316 = vmatpush1.msra.mxu0 %v929
        %1317 = vmatprep.subr.mxu0 0.0
        %1318 = vmatpush1.msra.mxu0 %v928
        %1319 = vmatprep.subr.mxu0 0.0
        %1320 = vmatpush1.msra.mxu0 %v927
        %1321 = vmatprep.subr.mxu0 0.0
        %1322 = vmatpush1.msra.mxu0 %v926
        %1323 = vmatprep.subr.mxu0 0.0
        %1324 = vmatpush1.msra.mxu0 %v925
        %1325 = vmatprep.subr.mxu0 0.0
        %1326 = vmatpush1.msra.mxu0 %v924
        %1327 = vmatprep.subr.mxu0 0.0
        %1328 = vmatpush1.msra.mxu0 %v923
        %1329 = vmatprep.subr.mxu0 0.0
        %1330 = vmatpush1.msra.mxu0 %v922
        %1331 = vmatprep.subr.mxu0 0.0
        %1332 = vmatpush1.msra.mxu0 %v921
        %1333 = vmatprep.subr.mxu0 0.0
        %1334 = vmatpush1.msra.mxu0 %v920
        %1335 = vmatprep.subr.mxu0 0.0
        %1336 = vmatpush2.msra.mxu0 %v951
        %1337 = vmatprep.subr.mxu0 0.0
        %1338 = vmatpush2.msra.mxu0 %v950
        %1339 = vmatprep.subr.mxu0 0.0
        %1340 = vmatpush2.msra.mxu0 %v949
        %1341 = vmatprep.subr.mxu0 0.0
        %1342 = vmatpush2.msra.mxu0 %v948
        %1343 = vmatprep.subr.mxu0 0.0
        %1344 = vmatpush2.msra.mxu0 %v947
        %1345 = vmatprep.subr.mxu0 0.0
        %1346 = vmatpush2.msra.mxu0 %v946
        %1347 = vmatprep.subr.mxu0 0.0
        %1348 = vmatpush2.msra.mxu0 %v945
        %1349 = vmatprep.subr.mxu0 0.0
        %1350 = vmatpush2.msra.mxu0 %v944
        %1351 = vmatprep.subr.mxu0 0.0
        %1352 = vmatpush2.msra.mxu0 %v943
        %1353 = vmatprep.subr.mxu0 0.0
        %1354 = vmatpush2.msra.mxu0 %v942
        %1355 = vmatprep.subr.mxu0 0.0
        %1356 = vmatpush2.msra.mxu0 %v941
        %1357 = vmatprep.subr.mxu0 0.0
        %1358 = vmatpush2.msra.mxu0 %v940
        %1359 = vmatprep.subr.mxu0 0.0
        %1360 = vmatpush2.msra.mxu0 %v939
        %1361 = vmatprep.subr.mxu0 0.0
        %1362 = vmatpush2.msra.mxu0 %v938
        %1363 = vmatprep.subr.mxu0 0.0
        %1364 = vmatpush2.msra.mxu0 %v937
        %1365 = vmatprep.subr.mxu0 0.0
        %1366 = vmatpush2.msra.mxu0 %v936
        %1367 = vmatprep.mubr.f32.mxu0 %v775
        %1368 = vmatmul.mubr.f32.gmra.mxu0 %v774
        %v1369 = vpop.f32.mrf.mxu0
        %v1370 = vadd.f32 %v1285, %v1369
        %v1371 = vpop.f32.mrf.mxu0
        %1372 = vmatprep.mubr.f32.mxu0 %v789
        %1373 = vmatmul.mubr.f32.gmra.mxu0 %v788
        %v1374 = vpop.f32.mrf.mxu0
        %v1375 = vadd.f32 %v1290, %v1374
        %v1376 = vpop.f32.mrf.mxu0
        %1377 = vmatprep.mubr.f32.mxu0 %v803
        %1378 = vmatmul.mubr.f32.gmra.mxu0 %v802
        %v1379 = vpop.f32.mrf.mxu0
        %v1380 = vadd.f32 %v1295, %v1379
        %v1381 = vpop.f32.mrf.mxu0
        %1382 = vmatprep.mubr.f32.mxu0 %v817
        %1383 = vmatmul.mubr.f32.gmra.mxu0 %v816
        %v1384 = vpop.f32.mrf.mxu0
        %v1385 = vadd.f32 %v1300, %v1384
        %v1386 = vpop.f32.mrf.mxu0
        %1387 = vdwg.mxu0
        %1388 = vmatprep.subr.mxu0 0.0
        %1389 = vmatpush1.msra.mxu0 %v967
        %1390 = vmatprep.subr.mxu0 0.0
        %1391 = vmatpush1.msra.mxu0 %v966
        %1392 = vmatprep.subr.mxu0 0.0
        %1393 = vmatpush1.msra.mxu0 %v965
        %1394 = vmatprep.subr.mxu0 0.0
        %1395 = vmatpush1.msra.mxu0 %v964
        %1396 = vmatprep.subr.mxu0 0.0
        %1397 = vmatpush1.msra.mxu0 %v963
        %1398 = vmatprep.subr.mxu0 0.0
        %1399 = vmatpush1.msra.mxu0 %v962
        %1400 = vmatprep.subr.mxu0 0.0
        %1401 = vmatpush1.msra.mxu0 %v961
        %1402 = vmatprep.subr.mxu0 0.0
        %1403 = vmatpush1.msra.mxu0 %v960
        %1404 = vmatprep.subr.mxu0 0.0
        %1405 = vmatpush1.msra.mxu0 %v959
        %1406 = vmatprep.subr.mxu0 0.0
        %1407 = vmatpush1.msra.mxu0 %v958
        %1408 = vmatprep.subr.mxu0 0.0
        %1409 = vmatpush1.msra.mxu0 %v957
        %1410 = vmatprep.subr.mxu0 0.0
        %1411 = vmatpush1.msra.mxu0 %v956
        %1412 = vmatprep.subr.mxu0 0.0
        %1413 = vmatpush1.msra.mxu0 %v955
        %1414 = vmatprep.subr.mxu0 0.0
        %1415 = vmatpush1.msra.mxu0 %v954
        %1416 = vmatprep.subr.mxu0 0.0
        %1417 = vmatpush1.msra.mxu0 %v953
        %1418 = vmatprep.subr.mxu0 0.0
        %1419 = vmatpush1.msra.mxu0 %v952
        %1420 = vmatprep.subr.mxu0 0.0
        %1421 = vmatpush2.msra.mxu0 %v983
        %1422 = vmatprep.subr.mxu0 0.0
        %1423 = vmatpush2.msra.mxu0 %v982
        %1424 = vmatprep.subr.mxu0 0.0
        %1425 = vmatpush2.msra.mxu0 %v981
        %1426 = vmatprep.subr.mxu0 0.0
        %1427 = vmatpush2.msra.mxu0 %v980
        %1428 = vmatprep.subr.mxu0 0.0
        %1429 = vmatpush2.msra.mxu0 %v979
        %1430 = vmatprep.subr.mxu0 0.0
        %1431 = vmatpush2.msra.mxu0 %v978
        %1432 = vmatprep.subr.mxu0 0.0
        %1433 = vmatpush2.msra.mxu0 %v977
        %1434 = vmatprep.subr.mxu0 0.0
        %1435 = vmatpush2.msra.mxu0 %v976
        %1436 = vmatprep.subr.mxu0 0.0
        %1437 = vmatpush2.msra.mxu0 %v975
        %1438 = vmatprep.subr.mxu0 0.0
        %1439 = vmatpush2.msra.mxu0 %v974
        %1440 = vmatprep.subr.mxu0 0.0
        %1441 = vmatpush2.msra.mxu0 %v973
        %1442 = vmatprep.subr.mxu0 0.0
        %1443 = vmatpush2.msra.mxu0 %v972
        %1444 = vmatprep.subr.mxu0 0.0
        %1445 = vmatpush2.msra.mxu0 %v971
        %1446 = vmatprep.subr.mxu0 0.0
        %1447 = vmatpush2.msra.mxu0 %v970
        %1448 = vmatprep.subr.mxu0 0.0
        %1449 = vmatpush2.msra.mxu0 %v969
        %1450 = vmatprep.subr.mxu0 0.0
        %1451 = vmatpush2.msra.mxu0 %v968
        %1452 = vmatprep.mubr.f32.mxu0 %v777
        %1453 = vmatmul.mubr.f32.gmra.mxu0 %v776
        %v1454 = vpop.f32.mrf.mxu0
        %v1455 = vadd.f32 %v1370, %v1454
        %v1456 = vpop.f32.mrf.mxu0
        %1457 = vmatprep.mubr.f32.mxu0 %v791
        %1458 = vmatmul.mubr.f32.gmra.mxu0 %v790
        %v1459 = vpop.f32.mrf.mxu0
        %v1460 = vadd.f32 %v1375, %v1459
        %v1461 = vpop.f32.mrf.mxu0
        %1462 = vmatprep.mubr.f32.mxu0 %v805
        %1463 = vmatmul.mubr.f32.gmra.mxu0 %v804
        %v1464 = vpop.f32.mrf.mxu0
        %v1465 = vadd.f32 %v1380, %v1464
        %v1466 = vpop.f32.mrf.mxu0
        %1467 = vmatprep.mubr.f32.mxu0 %v819
        %1468 = vmatmul.mubr.f32.gmra.mxu0 %v818
        %v1469 = vpop.f32.mrf.mxu0
        %v1470 = vadd.f32 %v1385, %v1469
        %v1471 = vpop.f32.mrf.mxu0
        %1472 = vdwg.mxu0
        %1473 = vmatprep.subr.mxu0 0.0
        %1474 = vmatpush1.msra.mxu0 %v999
        %1475 = vmatprep.subr.mxu0 0.0
        %1476 = vmatpush1.msra.mxu0 %v998
        %1477 = vmatprep.subr.mxu0 0.0
        %1478 = vmatpush1.msra.mxu0 %v997
        %1479 = vmatprep.subr.mxu0 0.0
        %1480 = vmatpush1.msra.mxu0 %v996
        %1481 = vmatprep.subr.mxu0 0.0
        %1482 = vmatpush1.msra.mxu0 %v995
        %1483 = vmatprep.subr.mxu0 0.0
        %1484 = vmatpush1.msra.mxu0 %v994
        %1485 = vmatprep.subr.mxu0 0.0
        %1486 = vmatpush1.msra.mxu0 %v993
        %1487 = vmatprep.subr.mxu0 0.0
        %1488 = vmatpush1.msra.mxu0 %v992
        %1489 = vmatprep.subr.mxu0 0.0
        %1490 = vmatpush1.msra.mxu0 %v991
        %1491 = vmatprep.subr.mxu0 0.0
        %1492 = vmatpush1.msra.mxu0 %v990
        %1493 = vmatprep.subr.mxu0 0.0
        %1494 = vmatpush1.msra.mxu0 %v989
        %1495 = vmatprep.subr.mxu0 0.0
        %1496 = vmatpush1.msra.mxu0 %v988
        %1497 = vmatprep.subr.mxu0 0.0
        %1498 = vmatpush1.msra.mxu0 %v987
        %1499 = vmatprep.subr.mxu0 0.0
        %1500 = vmatpush1.msra.mxu0 %v986
        %1501 = vmatprep.subr.mxu0 0.0
        %1502 = vmatpush1.msra.mxu0 %v985
        %1503 = vmatprep.subr.mxu0 0.0
        %1504 = vmatpush1.msra.mxu0 %v984
        %1505 = vmatprep.subr.mxu0 0.0
        %1506 = vmatpush2.msra.mxu0 %v1015
        %1507 = vmatprep.subr.mxu0 0.0
        %1508 = vmatpush2.msra.mxu0 %v1014
        %1509 = vmatprep.subr.mxu0 0.0
        %1510 = vmatpush2.msra.mxu0 %v1013
        %1511 = vmatprep.subr.mxu0 0.0
        %1512 = vmatpush2.msra.mxu0 %v1012
        %1513 = vmatprep.subr.mxu0 0.0
        %1514 = vmatpush2.msra.mxu0 %v1011
        %1515 = vmatprep.subr.mxu0 0.0
        %1516 = vmatpush2.msra.mxu0 %v1010
        %1517 = vmatprep.subr.mxu0 0.0
        %1518 = vmatpush2.msra.mxu0 %v1009
        %1519 = vmatprep.subr.mxu0 0.0
        %1520 = vmatpush2.msra.mxu0 %v1008
        %1521 = vmatprep.subr.mxu0 0.0
        %1522 = vmatpush2.msra.mxu0 %v1007
        %1523 = vmatprep.subr.mxu0 0.0
        %1524 = vmatpush2.msra.mxu0 %v1006
        %1525 = vmatprep.subr.mxu0 0.0
        %1526 = vmatpush2.msra.mxu0 %v1005
        %1527 = vmatprep.subr.mxu0 0.0
        %1528 = vmatpush2.msra.mxu0 %v1004
        %1529 = vmatprep.subr.mxu0 0.0
        %1530 = vmatpush2.msra.mxu0 %v1003
        %1531 = vmatprep.subr.mxu0 0.0
        %1532 = vmatpush2.msra.mxu0 %v1002
        %1533 = vmatprep.subr.mxu0 0.0
        %1534 = vmatpush2.msra.mxu0 %v1001
        %1535 = vmatprep.subr.mxu0 0.0
        %1536 = vmatpush2.msra.mxu0 %v1000
        %1537 = vmatprep.mubr.f32.mxu0 %v779
        %1538 = vmatmul.mubr.f32.gmra.mxu0 %v778
        %v1539 = vpop.f32.mrf.mxu0
        %v1540 = vadd.f32 %v1455, %v1539
        %v1541 = vpop.f32.mrf.mxu0
        %1542 = vmatprep.mubr.f32.mxu0 %v793
        %1543 = vmatmul.mubr.f32.gmra.mxu0 %v792
        %v1544 = vpop.f32.mrf.mxu0
        %v1545 = vadd.f32 %v1460, %v1544
        %v1546 = vpop.f32.mrf.mxu0
        %1547 = vmatprep.mubr.f32.mxu0 %v807
        %1548 = vmatmul.mubr.f32.gmra.mxu0 %v806
        %v1549 = vpop.f32.mrf.mxu0
        %v1550 = vadd.f32 %v1465, %v1549
        %v1551 = vpop.f32.mrf.mxu0
        %1552 = vmatprep.mubr.f32.mxu0 %v821
        %1553 = vmatmul.mubr.f32.gmra.mxu0 %v820
        %v1554 = vpop.f32.mrf.mxu0
        %v1555 = vadd.f32 %v1470, %v1554
        %v1556 = vpop.f32.mrf.mxu0
        %1557 = vdwg.mxu0
        %1558 = vmatprep.subr.mxu0 0.0
        %1559 = vmatpush1.msra.mxu0 %v1031
        %1560 = vmatprep.subr.mxu0 0.0
        %1561 = vmatpush1.msra.mxu0 %v1030
        %1562 = vmatprep.subr.mxu0 0.0
        %1563 = vmatpush1.msra.mxu0 %v1029
        %1564 = vmatprep.subr.mxu0 0.0
        %1565 = vmatpush1.msra.mxu0 %v1028
        %1566 = vmatprep.subr.mxu0 0.0
        %1567 = vmatpush1.msra.mxu0 %v1027
        %1568 = vmatprep.subr.mxu0 0.0
        %1569 = vmatpush1.msra.mxu0 %v1026
        %1570 = vmatprep.subr.mxu0 0.0
        %1571 = vmatpush1.msra.mxu0 %v1025
        %1572 = vmatprep.subr.mxu0 0.0
        %1573 = vmatpush1.msra.mxu0 %v1024
        %1574 = vmatprep.subr.mxu0 0.0
        %1575 = vmatpush1.msra.mxu0 %v1023
        %1576 = vmatprep.subr.mxu0 0.0
        %1577 = vmatpush1.msra.mxu0 %v1022
        %1578 = vmatprep.subr.mxu0 0.0
        %1579 = vmatpush1.msra.mxu0 %v1021
        %1580 = vmatprep.subr.mxu0 0.0
        %1581 = vmatpush1.msra.mxu0 %v1020
        %1582 = vmatprep.subr.mxu0 0.0
        %1583 = vmatpush1.msra.mxu0 %v1019
        %1584 = vmatprep.subr.mxu0 0.0
        %1585 = vmatpush1.msra.mxu0 %v1018
        %1586 = vmatprep.subr.mxu0 0.0
        %1587 = vmatpush1.msra.mxu0 %v1017
        %1588 = vmatprep.subr.mxu0 0.0
        %1589 = vmatpush1.msra.mxu0 %v1016
        %1590 = vmatprep.subr.mxu0 0.0
        %1591 = vmatpush2.msra.mxu0 %v1047
        %1592 = vmatprep.subr.mxu0 0.0
        %1593 = vmatpush2.msra.mxu0 %v1046
        %1594 = vmatprep.subr.mxu0 0.0
        %1595 = vmatpush2.msra.mxu0 %v1045
        %1596 = vmatprep.subr.mxu0 0.0
        %1597 = vmatpush2.msra.mxu0 %v1044
        %1598 = vmatprep.subr.mxu0 0.0
        %1599 = vmatpush2.msra.mxu0 %v1043
        %1600 = vmatprep.subr.mxu0 0.0
        %1601 = vmatpush2.msra.mxu0 %v1042
        %1602 = vmatprep.subr.mxu0 0.0
        %1603 = vmatpush2.msra.mxu0 %v1041
        %1604 = vmatprep.subr.mxu0 0.0
        %1605 = vmatpush2.msra.mxu0 %v1040
        %1606 = vmatprep.subr.mxu0 0.0
        %1607 = vmatpush2.msra.mxu0 %v1039
        %1608 = vmatprep.subr.mxu0 0.0
        %1609 = vmatpush2.msra.mxu0 %v1038
        %1610 = vmatprep.subr.mxu0 0.0
        %1611 = vmatpush2.msra.mxu0 %v1037
        %1612 = vmatprep.subr.mxu0 0.0
        %1613 = vmatpush2.msra.mxu0 %v1036
        %1614 = vmatprep.subr.mxu0 0.0
        %1615 = vmatpush2.msra.mxu0 %v1035
        %1616 = vmatprep.subr.mxu0 0.0
        %1617 = vmatpush2.msra.mxu0 %v1034
        %1618 = vmatprep.subr.mxu0 0.0
        %1619 = vmatpush2.msra.mxu0 %v1033
        %1620 = vmatprep.subr.mxu0 0.0
        %1621 = vmatpush2.msra.mxu0 %v1032
        %1622 = vmatprep.mubr.f32.mxu0 %v781
        %1623 = vmatmul.mubr.f32.gmra.mxu0 %v780
        %v1624 = vpop.f32.mrf.mxu0
        %v1625 = vadd.f32 %v1540, %v1624
        %v1626 = vpop.f32.mrf.mxu0
        %1627 = vmatprep.mubr.f32.mxu0 %v795
        %1628 = vmatmul.mubr.f32.gmra.mxu0 %v794
        %v1629 = vpop.f32.mrf.mxu0
        %v1630 = vadd.f32 %v1545, %v1629
        %v1631 = vpop.f32.mrf.mxu0
        %1632 = vmatprep.mubr.f32.mxu0 %v809
        %1633 = vmatmul.mubr.f32.gmra.mxu0 %v808
        %v1634 = vpop.f32.mrf.mxu0
        %v1635 = vadd.f32 %v1550, %v1634
        %v1636 = vpop.f32.mrf.mxu0
        %1637 = vmatprep.mubr.f32.mxu0 %v823
        %1638 = vmatmul.mubr.f32.gmra.mxu0 %v822
        %v1639 = vpop.f32.mrf.mxu0
        %v1640 = vadd.f32 %v1555, %v1639
        %v1641 = vpop.f32.mrf.mxu0
        %1642 = vdwg.mxu0
        %v1643 = vxor.u32 %v1625, 2147483648
        %v1644 = vxor.u32 %v1630, 2147483648
        %v1645 = vxor.u32 %v1635, 2147483648
        %v1646 = vxor.u32 %v1640, 2147483648
        %v1647 = vmul.f32 %v1643, 1.442695
        %v1648 = vpow.pop %v1647
        %v1649 = vmul.f32 %v1644, 1.442695
        %v1650 = vpow.pop %v1649
        %v1651 = vmul.f32 %v1645, 1.442695
        %v1652 = vpow.pop %v1651
        %v1653 = vmul.f32 %v1646, 1.442695
        %v1654 = vpow.pop %v1653
        %v1655 = vadd.f32 %v1648, 1.0
        %v1656 = vadd.f32 %v1650, 1.0
        %v1657 = vadd.f32 %v1652, 1.0
        %v1658 = vadd.f32 %v1654, 1.0
        %v1659 = vrcp.pop %v1655
        %v1660 = vmul.f32 1.0, %v1659
        %v1661 = vrcp.pop %v1656
        %v1662 = vmul.f32 1.0, %v1661
        %v1663 = vrcp.pop %v1657
        %v1664 = vmul.f32 1.0, %v1663
        %v1665 = vrcp.pop %v1658
        %v1666 = vmul.f32 1.0, %v1665
        %1667 = vst [vmem:[%s177] sm:$0xff] %v1660
        %1668 = vst [vmem:[%s177 + $0x8] sm:$0xff] %v1662
        %1669 = vst [vmem:[%s177 + $0x10] sm:$0xff] %v1664
        %1670 = vst [vmem:[%s177 + $0x18] sm:$0xff] %v1666
        %s1671 = sand.u32 %s75, 1
        %s1672 = scalar_lea.sflag [#allocation6], %s1671
        %s1673 = sand.u32 %s75, 1
        %s1674 = smul.addr %s1673, 32
        %s1675 = scalar_lea.vmem [#allocation9], %s1674
        // Predicated region
        $region37: #{tpu_custom_call.1} parent=27 // pred_check
          %p1676 = pneg %p85
        $region38: #{tpu_custom_call.1} parent=27 // pred_check_branch
          %1678 = sbr.rel (%p1676) target = $region40
        $region39: #{tpu_custom_call.1} parent=27 // pred_region
          %s1679 = smul.u32 2, %s20
          %s1681 = ssub.s32 512, 512
          %1682 = vsyncadd %s1672, %s1681
          %s1683 = smul.addr %s1679, 2
          %s1684 = smul.addr %s1683, 128
          %s1685 = scalar_lea.hbm %s2, %s1684
          %s1686 = sshll.u32 %s1675, 4
          %s1687 = int_to_ptr.vmem [resolvable:$true] %s1686
          %1692 = dma.vmem_to_hbm [thread:$0]  %s1687, 512, %s1685, %s1672, 128, 128, 8
        $region40: #{tpu_custom_call.1} parent=27 // pred_fallthru
          _
      $region28: #{tpu_custom_call.1} parent=5 // pred_fallthru
        _
      %p1693 = scmp.le.s32.totalorder 2, %s15
      // Predicated region
      $region41: #{tpu_custom_call.1} parent=5 // pred_check
        %p1694 = pneg %p1693
      $region42: #{tpu_custom_call.1} parent=5 // pred_check_branch
        %1696 = sbr.rel (%p1694) target = $region44
      $region43: #{tpu_custom_call.1} parent=5 // pred_region
        %s1697 = ssub.s32 %s15, 2
        // Predicated region
        $region45: #{tpu_custom_call.1} parent=43 // pred_check
          %p1698 = pneg %p91
        $region46: #{tpu_custom_call.1} parent=43 // pred_check_branch
          %1700 = sbr.rel (%p1698) target = $region48
        $region47: #{tpu_custom_call.1} parent=43 // pred_region
          %s1701 = sand.u32 %s76, 1
          %s1702 = scalar_lea.sflag [#allocation6], %s1701
          %s1703 = sand.u32 %s76, 1
          %s1704 = smul.addr %s1703, 32
          %s1705 = scalar_lea.vmem [#allocation9], %s1704
          %1706 = dma.done %s1702, 512
        $region48: #{tpu_custom_call.1} parent=43 // pred_fallthru
          _
      $region44: #{tpu_custom_call.1} parent=5 // pred_fallthru
        _
    $region6: #{tpu_custom_call.1} parent=1 // loop_footer
      %s19 = sadd.s32 1, %s15
    $region7: #{tpu_custom_call.1} parent=1 // loop_footer_branch
      %14 = sbr.rel target = $region3
    $region8: #{tpu_custom_call.1} parent=1 // loop_exit
      _
    %1707 = vsyncpa [#allocation5], 1
    %s1708 = scalar_lea.sflag [#allocation5], 1
    %1709 = vsyncpa %s1708, 1
    %1710 = vsyncpa [#allocation8], 1
    %1711 = vsyncpa [#allocation6], 1
    %s1712 = scalar_lea.sflag [#allocation6], 1
    %1713 = vsyncpa %s1712, 1

</llo_original>
